<compile_context>
chip_gen: v5e
topology: v5e:2x2
jax: 0.10.0
libtpu: 0.0.40
codegen_flags: <defaults>
</compile_context>

<pallas_src>
import functools

import numpy as np

import jax
import jax.numpy as jnp
from jax import lax
from jax.experimental import pallas as pl
from jax.experimental.pallas import tpu as pltpu


# ------------------------------ fused C3 kernel -------------------------------

def _c3_kernel(n_blocks, shortcut, H, W, use_mxu, x_ref, m_ref, *refs):
    """Whole C3 forward for a block of images, channels-first (C, L) layout."""
    o_ref = refs[-1]
    wr = refs[:-1]
    L = x_ref.shape[-1]
    cdt = jnp.bfloat16 if use_mxu else jnp.float32

    def mm(w, inp):
        # (cout, cin) x (cin, L) -> f32 (cout, L)
        if use_mxu:
            # bf16 operands on the MXU, f32 accumulate.
            return jnp.dot(w, inp.astype(cdt), preferred_element_type=jnp.float32)
        # Tiny channel counts: MXU would be <1% utilized and pay full push/pop
        # latency per dot -> do a handful of VPU broadcast-FMAs in f32 instead.
        xf = inp.astype(jnp.float32)
        acc = w[:, 0:1] * xf[0:1, :]
        for ci in range(1, w.shape[1]):
            acc = acc + w[:, ci:ci + 1] * xf[ci:ci + 1, :]
        return acc

    def silu(y):                      # f32 epilogue (v5e VPU/EUP have no bf16)
        return y * jax.nn.sigmoid(y)

    w1, b1, w2, b2, w3a, w3b, b3 = wr[:7]
    blk = wr[7:]

    x = x_ref[...]
    a = silu(mm(w1[...], x) + b1[...])            # cv1 branch (c_, L), f32
    byp = silu(mm(w2[...], x) + b2[...])          # cv2 bypass  (c_, L), f32

    # Static lane shifts for the 9 taps of a 3x3 'same' conv over flat lanes.
    shifts = [(-((dh - 1) * W + (dw - 1))) % L
              for dh in range(3) for dw in range(3)]

    for i in range(n_blocks):
        wb1, bb1, wb2, bb2 = blk[4 * i: 4 * i + 4]
        h1 = silu(mm(wb1[...], a) + bb1[...]).astype(cdt)     # 1x1 conv
        acc = None
        for t, shift in enumerate(shifts):
            rolled = pltpu.roll(h1, shift=shift, axis=1) if shift else h1
            # Post-matmul f32 mask multiply: zeros padded taps AND any
            # cross-image bleed introduced by rolling over the flat lane axis.
            part = mm(wb2[t], rolled) * m_ref[t:t + 1, :]
            acc = part if acc is None else acc + part
        h2 = silu(acc + bb2[...])                              # 3x3 conv
        a = a + h2 if shortcut else h2                         # Bottleneck.add

    # cv3 over the channel-concat [a ; byp], done as two matmuls (no concat).
    out = silu(mm(w3a[...], a) + mm(w3b[...], byp) + b3[...])
    o_ref[...] = out.astype(o_ref.dtype)


# --------------------------------- wrapper ------------------------------------

def _fold_pw(w_hwio, scale, bias, wdt):
    # HWIO (1,1,cin,cout) -> matmul weight (cout, cin) with BN scale folded in.
    wm = jnp.transpose(w_hwio[0, 0], (1, 0)) * scale[:, None]
    return wm.astype(wdt), bias.reshape(-1, 1).astype(jnp.float32)


def _fold_k3(w_hwio, scale, bias, wdt):
    # HWIO (3,3,cin,cout) -> (9, cout, cin); tap index t = kh*3 + kw.
    w = jnp.transpose(w_hwio, (0, 1, 3, 2)) * scale[None, None, :, None]
    w = w.reshape(9, w.shape[2], w.shape[3])
    return w.astype(wdt), bias.reshape(-1, 1).astype(jnp.float32)


def _vmem_limit_bytes():
    cap = 64 * 1024 * 1024                     # conservative default (v7x physical)
    try:
        info = pltpu.get_tpu_info()
        cap = int(getattr(info, "vmem_capacity_bytes", cap))
    except Exception:
        pass
    # ~96 MiB on v5e/v6e (128 MiB physical), ~48 MiB on v7x (64 MiB physical).
    return min(cap * 3 // 4, 100 * 1024 * 1024)


def _pick_batch_tile(N, HW, per_image_bytes, budget):
    # Largest images-per-step whose activations fit the budget while keeping the
    # lane extent a multiple of 128 (lane-dense, unmasked vst) or full extent.
    cands = [b for b in range(1, N + 1)
             if N % b == 0 and ((b * HW) % 128 == 0 or b == N)]
    fitting = [b for b in cands if b * per_image_bytes <= budget]
    return max(fitting) if fitting else min(cands)


def _const_index(nd):
    return lambda i: (0,) * nd


def c3_forward(params, x_nchw, shortcut=True):
    N, c1, H, W = x_nchw.shape
    HW = H * W
    n_blocks = len(params["m"])
    c_ = params["cv1"]["w"].shape[-1]
    c2 = params["cv3"]["w"].shape[-1]

    # bf16 MXU matmuls for real channel widths; f32 VPU-FMAs for degenerate ones.
    use_mxu = min(c1, c_) >= 16
    wdt = jnp.bfloat16 if use_mxu else jnp.float32

    vmem_limit = _vmem_limit_bytes()
    per_image_bytes = HW * 4 * (c1 + c2 + 8 * c_)        # rough f32 footprint
    b_tile = _pick_batch_tile(N, HW, per_image_bytes, vmem_limit // 3)
    L = b_tile * HW
    grid = (N // b_tile,)

    # Host-precomputed 3x3 boundary masks (one row per tap), resident operand.
    lane = np.arange(L)
    hh, ww = (lane % HW) // W, lane % W
    rows = []
    for dh in range(3):
        for dw in range(3):
            rows.append((((hh + dh - 1) >= 0) & ((hh + dh - 1) < H) &
                         ((ww + dw - 1) >= 0) & ((ww + dw - 1) < W))
                        .astype(np.float32))
    masks = jnp.asarray(np.stack(rows, axis=0))          # (9, L) f32

    ops, specs = [], []

    def add(*arrs):
        # Constant operands (index_map always block 0): DMA'd once, stay
        # resident.  (They are small; skipping pl.Buffered(1) deliberately.)
        for arr in arrs:
            ops.append(arr)
            specs.append(pl.BlockSpec(arr.shape, _const_index(arr.ndim)))

    w1, b1 = _fold_pw(params["cv1"]["w"], params["cv1"]["scale"], params["cv1"]["bias"], wdt)
    w2, b2 = _fold_pw(params["cv2"]["w"], params["cv2"]["scale"], params["cv2"]["bias"], wdt)
    w3, b3 = _fold_pw(params["cv3"]["w"], params["cv3"]["scale"], params["cv3"]["bias"], wdt)
    add(w1, b1, w2, b2, w3[:, :c_], w3[:, c_:], b3)       # cv3 weight pre-split
    for blk in params["m"]:
        wb1, bb1 = _fold_pw(blk["cv1"]["w"], blk["cv1"]["scale"], blk["cv1"]["bias"], wdt)
        wb2, bb2 = _fold_k3(blk["cv2"]["w"], blk["cv2"]["scale"], blk["cv2"]["bias"], wdt)
        add(wb1, bb1, wb2, bb2)

    # Channels-first (C, N*H*W): lane axis flattens (image, row, col) so every
    # load/store and matmul RHS is lane-dense; one transpose outside the kernel.
    xf = jnp.transpose(x_nchw.reshape(N, c1, HW), (1, 0, 2)).reshape(c1, N * HW)
    if use_mxu:
        xf = xf.astype(jnp.bfloat16)                      # halves input DMA bytes

    kernel = functools.partial(_c3_kernel, n_blocks, shortcut, H, W, use_mxu)
    out = pl.pallas_call(
        kernel,
        out_shape=jax.ShapeDtypeStruct((c2, N * HW), x_nchw.dtype),
        grid=grid,
        in_specs=[pl.BlockSpec((c1, L), lambda i: (0, i)),
                  pl.BlockSpec((9, L), lambda i: (0, 0))] + specs,
        out_specs=pl.BlockSpec((c2, L), lambda i: (0, i)),
        compiler_params=pltpu.CompilerParams(
            dimension_semantics=("parallel",),
            vmem_limit_bytes=vmem_limit),
    )(xf, masks, *ops)
    return jnp.transpose(out.reshape(c2, N, HW), (1, 0, 2)).reshape(N, c2, H, W)


# ------------------------ parameters (deterministic) ---------------------------

def _fold_bn(gamma, beta, mean, var, eps=1e-3):          # BatchNorm2d(eps=0.001)
    scale = gamma / jnp.sqrt(var + eps)
    bias = beta - mean * scale
    return scale, bias


def init_c3_params(key, c1, c2, n=1, e=0.5):
    c_ = int(c2 * e)
    keys = iter(jax.random.split(key, 5 * (3 + 2 * n)))

    def conv_block(cin, cout, k):
        w = 0.1 * jax.random.normal(next(keys), (k, k, cin, cout), jnp.float32)
        gamma = jax.random.uniform(next(keys), (cout,), jnp.float32, 0.5, 1.5)
        beta = 0.1 * jax.random.normal(next(keys), (cout,), jnp.float32)
        mean = 0.1 * jax.random.normal(next(keys), (cout,), jnp.float32)
        var = jax.random.uniform(next(keys), (cout,), jnp.float32, 0.5, 1.5)
        scale, bias = _fold_bn(gamma, beta, mean, var)
        return dict(w=w, scale=scale, bias=bias)

    return dict(
        c=c_,
        cv1=conv_block(c1, c_, 1),
        cv2=conv_block(c1, c_, 1),
        cv3=conv_block(2 * c_, c2, 1),
        m=[dict(cv1=conv_block(c_, c_, 1), cv2=conv_block(c_, c_, 3))
           for _ in range(n)],
    )


# ---------------------------- pure-JAX reference -------------------------------

def _conv_bn_silu_ref(x, w, scale, bias):
    out = lax.conv_general_dilated(
        x, w, window_strides=(1, 1), padding="SAME",
        dimension_numbers=("NHWC", "HWIO", "NHWC"))
    y = out * scale + bias
    return y * jax.nn.sigmoid(y)


def c3_ref(params, x_nchw, shortcut=True):
    x = jnp.transpose(x_nchw, (0, 2, 3, 1))
    a = _conv_bn_silu_ref(x, params["cv1"]["w"],
                          params["cv1"]["scale"], params["cv1"]["bias"])
    b = _conv_bn_silu_ref(x, params["cv2"]["w"],
                          params["cv2"]["scale"], params["cv2"]["bias"])
    for blk in params["m"]:
        h = _conv_bn_silu_ref(a, blk["cv1"]["w"],
                              blk["cv1"]["scale"], blk["cv1"]["bias"])
        h = _conv_bn_silu_ref(h, blk["cv2"]["w"],
                              blk["cv2"]["scale"], blk["cv2"]["bias"])
        a = a + h if shortcut else h
    cat = jnp.concatenate([a, b], axis=-1)
    out = _conv_bn_silu_ref(cat, params["cv3"]["w"],
                            params["cv3"]["scale"], params["cv3"]["bias"])
    return jnp.transpose(out, (0, 3, 1, 2))


# ------------------------------------ main -------------------------------------

if __name__ == "__main__":
    key = jax.random.PRNGKey(0)
    k1, k2, k3, k4 = jax.random.split(key, 4)

    # Config A: tiny channels (matches the module's toy shapes) -> f32 VPU path.
    c1, c2, n = 4, 4, 1
    x = jax.random.normal(k1, (2, c1, 16, 16), jnp.float32)   # NCHW, like PyTorch
    params = init_c3_params(k2, c1, c2, n=n)
    out = jax.block_until_ready(jax.jit(functools.partial(c3_forward, params))(x))
    ref = c3_ref(params, x)
    assert out.shape == (2, c2, 16, 16), out.shape
    err_a = float(jnp.max(jnp.abs(out - ref)))
    assert jnp.allclose(out, ref, atol=1e-3, rtol=1e-3), err_a

    # Config B: wider channels -> bf16 MXU path (f32 accumulate / epilogue).
    c1b, c2b, nb = 64, 64, 2
    xb = jax.random.normal(k3, (2, c1b, 16, 16), jnp.float32)
    params_b = init_c3_params(k4, c1b, c2b, n=nb)
    out_b = jax.block_until_ready(
        jax.jit(functools.partial(c3_forward, params_b))(xb))
    ref_b = c3_ref(params_b, xb)
    assert out_b.shape == (2, c2b, 16, 16), out_b.shape
    err_b = float(jnp.max(jnp.abs(out_b - ref_b)))
    assert jnp.allclose(out_b, ref_b, atol=3e-2, rtol=3e-2), err_b

    print("KERNEL_OK")
</pallas_src>

<mosaic_0001>
module attributes {stable_mosaic.version = 11 : i64} {
  func.func @_c3_kernel(%arg0: i32, %arg1: memref<4x512xf32, #tpu.memory_space<vmem>>, %arg2: memref<9x512xf32, #tpu.memory_space<vmem>>, %arg3: memref<2x4xf32, #tpu.memory_space<vmem>>, %arg4: memref<2x1xf32, #tpu.memory_space<vmem>>, %arg5: memref<2x4xf32, #tpu.memory_space<vmem>>, %arg6: memref<2x1xf32, #tpu.memory_space<vmem>>, %arg7: memref<4x2xf32, #tpu.memory_space<vmem>>, %arg8: memref<4x2xf32, #tpu.memory_space<vmem>>, %arg9: memref<4x1xf32, #tpu.memory_space<vmem>>, %arg10: memref<2x2xf32, #tpu.memory_space<vmem>>, %arg11: memref<2x1xf32, #tpu.memory_space<vmem>>, %arg12: memref<9x2x2xf32, #tpu.memory_space<vmem>>, %arg13: memref<2x1xf32, #tpu.memory_space<vmem>>, %arg14: memref<4x512xf32, #tpu.memory_space<vmem>>) attributes {dimension_semantics = [#tpu.dimension_semantics<parallel>], iteration_bounds = array<i64: 1>, scalar_prefetch = 0 : i64, scratch_operands = 0 : i64, tpu.core_type = #tpu.core_type<tc>, window_params = [{transform_indices = @transform_0, window_bounds = array<i64: 4, 512>}, {pipeline_mode = #tpu.pipeline_mode<synchronous>, transform_indices = @transform_1, window_bounds = array<i64: 9, 512>}, {pipeline_mode = #tpu.pipeline_mode<synchronous>, transform_indices = @transform_2, window_bounds = array<i64: 2, 4>}, {pipeline_mode = #tpu.pipeline_mode<synchronous>, transform_indices = @transform_3, window_bounds = array<i64: 2, 1>}, {pipeline_mode = #tpu.pipeline_mode<synchronous>, transform_indices = @transform_4, window_bounds = array<i64: 2, 4>}, {pipeline_mode = #tpu.pipeline_mode<synchronous>, transform_indices = @transform_5, window_bounds = array<i64: 2, 1>}, {pipeline_mode = #tpu.pipeline_mode<synchronous>, transform_indices = @transform_6, window_bounds = array<i64: 4, 2>}, {pipeline_mode = #tpu.pipeline_mode<synchronous>, transform_indices = @transform_7, window_bounds = array<i64: 4, 2>}, {pipeline_mode = #tpu.pipeline_mode<synchronous>, transform_indices = @transform_8, window_bounds = array<i64: 4, 1>}, {pipeline_mode = #tpu.pipeline_mode<synchronous>, transform_indices = @transform_9, window_bounds = array<i64: 2, 2>}, {pipeline_mode = #tpu.pipeline_mode<synchronous>, transform_indices = @transform_10, window_bounds = array<i64: 2, 1>}, {pipeline_mode = #tpu.pipeline_mode<synchronous>, transform_indices = @transform_11, window_bounds = array<i64: 9, 2, 2>}, {pipeline_mode = #tpu.pipeline_mode<synchronous>, transform_indices = @transform_12, window_bounds = array<i64: 2, 1>}, {transform_indices = @transform_13, window_bounds = array<i64: 4, 512>}]} {
    %c0 = arith.constant 0 : index
    %c0_0 = arith.constant 0 : index
    %0 = vector.load %arg1[%c0, %c0_0] : memref<4x512xf32, #tpu.memory_space<vmem>>, vector<4x512xf32>
    %c0_1 = arith.constant 0 : index
    %c0_2 = arith.constant 0 : index
    %1 = vector.load %arg3[%c0_1, %c0_2] : memref<2x4xf32, #tpu.memory_space<vmem>>, vector<2x4xf32>
    %2 = vector.extract_strided_slice %1 {offsets = [0, 0], sizes = [2, 1], strides = [1, 1]} : vector<2x4xf32> to vector<2x1xf32>
    %3 = vector.extract_strided_slice %0 {offsets = [0, 0], sizes = [1, 512], strides = [1, 1]} : vector<4x512xf32> to vector<1x512xf32>
    %4 = vector.broadcast %2 : vector<2x1xf32> to vector<2x512xf32>
    %5 = vector.broadcast %3 : vector<1x512xf32> to vector<2x512xf32>
    %6 = arith.mulf %4, %5 : vector<2x512xf32>
    %7 = vector.extract_strided_slice %1 {offsets = [0, 1], sizes = [2, 1], strides = [1, 1]} : vector<2x4xf32> to vector<2x1xf32>
    %8 = vector.extract_strided_slice %0 {offsets = [1, 0], sizes = [1, 512], strides = [1, 1]} : vector<4x512xf32> to vector<1x512xf32>
    %9 = vector.broadcast %7 : vector<2x1xf32> to vector<2x512xf32>
    %10 = vector.broadcast %8 : vector<1x512xf32> to vector<2x512xf32>
    %11 = arith.mulf %9, %10 : vector<2x512xf32>
    %12 = arith.addf %6, %11 : vector<2x512xf32>
    %13 = vector.extract_strided_slice %1 {offsets = [0, 2], sizes = [2, 1], strides = [1, 1]} : vector<2x4xf32> to vector<2x1xf32>
    %14 = vector.extract_strided_slice %0 {offsets = [2, 0], sizes = [1, 512], strides = [1, 1]} : vector<4x512xf32> to vector<1x512xf32>
    %15 = vector.broadcast %13 : vector<2x1xf32> to vector<2x512xf32>
    %16 = vector.broadcast %14 : vector<1x512xf32> to vector<2x512xf32>
    %17 = arith.mulf %15, %16 : vector<2x512xf32>
    %18 = arith.addf %12, %17 : vector<2x512xf32>
    %19 = vector.extract_strided_slice %1 {offsets = [0, 3], sizes = [2, 1], strides = [1, 1]} : vector<2x4xf32> to vector<2x1xf32>
    %20 = vector.extract_strided_slice %0 {offsets = [3, 0], sizes = [1, 512], strides = [1, 1]} : vector<4x512xf32> to vector<1x512xf32>
    %21 = vector.broadcast %19 : vector<2x1xf32> to vector<2x512xf32>
    %22 = vector.broadcast %20 : vector<1x512xf32> to vector<2x512xf32>
    %23 = arith.mulf %21, %22 : vector<2x512xf32>
    %24 = arith.addf %18, %23 : vector<2x512xf32>
    %c0_3 = arith.constant 0 : index
    %c0_4 = arith.constant 0 : index
    %25 = vector.load %arg4[%c0_3, %c0_4] : memref<2x1xf32, #tpu.memory_space<vmem>>, vector<2x1xf32>
    %26 = vector.broadcast %25 : vector<2x1xf32> to vector<2x512xf32>
    %27 = arith.addf %24, %26 : vector<2x512xf32>
    %28 = arith.negf %27 : vector<2x512xf32>
    %29 = math.exp %28 : vector<2x512xf32>
    %cst = arith.constant 1.000000e+00 : f32
    %30 = vector.broadcast %cst : f32 to vector<2x512xf32>
    %31 = arith.addf %30, %29 : vector<2x512xf32>
    %32 = arith.divf %30, %31 : vector<2x512xf32>
    %33 = arith.mulf %27, %32 : vector<2x512xf32>
    %c0_5 = arith.constant 0 : index
    %c0_6 = arith.constant 0 : index
    %34 = vector.load %arg5[%c0_5, %c0_6] : memref<2x4xf32, #tpu.memory_space<vmem>>, vector<2x4xf32>
    %35 = vector.extract_strided_slice %34 {offsets = [0, 0], sizes = [2, 1], strides = [1, 1]} : vector<2x4xf32> to vector<2x1xf32>
    %36 = vector.extract_strided_slice %0 {offsets = [0, 0], sizes = [1, 512], strides = [1, 1]} : vector<4x512xf32> to vector<1x512xf32>
    %37 = vector.broadcast %35 : vector<2x1xf32> to vector<2x512xf32>
    %38 = vector.broadcast %36 : vector<1x512xf32> to vector<2x512xf32>
    %39 = arith.mulf %37, %38 : vector<2x512xf32>
    %40 = vector.extract_strided_slice %34 {offsets = [0, 1], sizes = [2, 1], strides = [1, 1]} : vector<2x4xf32> to vector<2x1xf32>
    %41 = vector.extract_strided_slice %0 {offsets = [1, 0], sizes = [1, 512], strides = [1, 1]} : vector<4x512xf32> to vector<1x512xf32>
    %42 = vector.broadcast %40 : vector<2x1xf32> to vector<2x512xf32>
    %43 = vector.broadcast %41 : vector<1x512xf32> to vector<2x512xf32>
    %44 = arith.mulf %42, %43 : vector<2x512xf32>
    %45 = arith.addf %39, %44 : vector<2x512xf32>
    %46 = vector.extract_strided_slice %34 {offsets = [0, 2], sizes = [2, 1], strides = [1, 1]} : vector<2x4xf32> to vector<2x1xf32>
    %47 = vector.extract_strided_slice %0 {offsets = [2, 0], sizes = [1, 512], strides = [1, 1]} : vector<4x512xf32> to vector<1x512xf32>
    %48 = vector.broadcast %46 : vector<2x1xf32> to vector<2x512xf32>
    %49 = vector.broadcast %47 : vector<1x512xf32> to vector<2x512xf32>
    %50 = arith.mulf %48, %49 : vector<2x512xf32>
    %51 = arith.addf %45, %50 : vector<2x512xf32>
    %52 = vector.extract_strided_slice %34 {offsets = [0, 3], sizes = [2, 1], strides = [1, 1]} : vector<2x4xf32> to vector<2x1xf32>
    %53 = vector.extract_strided_slice %0 {offsets = [3, 0], sizes = [1, 512], strides = [1, 1]} : vector<4x512xf32> to vector<1x512xf32>
    %54 = vector.broadcast %52 : vector<2x1xf32> to vector<2x512xf32>
    %55 = vector.broadcast %53 : vector<1x512xf32> to vector<2x512xf32>
    %56 = arith.mulf %54, %55 : vector<2x512xf32>
    %57 = arith.addf %51, %56 : vector<2x512xf32>
    %c0_7 = arith.constant 0 : index
    %c0_8 = arith.constant 0 : index
    %58 = vector.load %arg6[%c0_7, %c0_8] : memref<2x1xf32, #tpu.memory_space<vmem>>, vector<2x1xf32>
    %59 = vector.broadcast %58 : vector<2x1xf32> to vector<2x512xf32>
    %60 = arith.addf %57, %59 : vector<2x512xf32>
    %61 = arith.negf %60 : vector<2x512xf32>
    %62 = math.exp %61 : vector<2x512xf32>
    %cst_9 = arith.constant 1.000000e+00 : f32
    %63 = vector.broadcast %cst_9 : f32 to vector<2x512xf32>
    %64 = arith.addf %63, %62 : vector<2x512xf32>
    %65 = arith.divf %63, %64 : vector<2x512xf32>
    %66 = arith.mulf %60, %65 : vector<2x512xf32>
    %c0_10 = arith.constant 0 : index
    %c0_11 = arith.constant 0 : index
    %67 = vector.load %arg10[%c0_10, %c0_11] : memref<2x2xf32, #tpu.memory_space<vmem>>, vector<2x2xf32>
    %68 = vector.extract_strided_slice %67 {offsets = [0, 0], sizes = [2, 1], strides = [1, 1]} : vector<2x2xf32> to vector<2x1xf32>
    %69 = vector.extract_strided_slice %33 {offsets = [0, 0], sizes = [1, 512], strides = [1, 1]} : vector<2x512xf32> to vector<1x512xf32>
    %70 = vector.broadcast %68 : vector<2x1xf32> to vector<2x512xf32>
    %71 = vector.broadcast %69 : vector<1x512xf32> to vector<2x512xf32>
    %72 = arith.mulf %70, %71 : vector<2x512xf32>
    %73 = vector.extract_strided_slice %67 {offsets = [0, 1], sizes = [2, 1], strides = [1, 1]} : vector<2x2xf32> to vector<2x1xf32>
    %74 = vector.extract_strided_slice %33 {offsets = [1, 0], sizes = [1, 512], strides = [1, 1]} : vector<2x512xf32> to vector<1x512xf32>
    %75 = vector.broadcast %73 : vector<2x1xf32> to vector<2x512xf32>
    %76 = vector.broadcast %74 : vector<1x512xf32> to vector<2x512xf32>
    %77 = arith.mulf %75, %76 : vector<2x512xf32>
    %78 = arith.addf %72, %77 : vector<2x512xf32>
    %c0_12 = arith.constant 0 : index
    %c0_13 = arith.constant 0 : index
    %79 = vector.load %arg11[%c0_12, %c0_13] : memref<2x1xf32, #tpu.memory_space<vmem>>, vector<2x1xf32>
    %80 = vector.broadcast %79 : vector<2x1xf32> to vector<2x512xf32>
    %81 = arith.addf %78, %80 : vector<2x512xf32>
    %82 = arith.negf %81 : vector<2x512xf32>
    %83 = math.exp %82 : vector<2x512xf32>
    %cst_14 = arith.constant 1.000000e+00 : f32
    %84 = vector.broadcast %cst_14 : f32 to vector<2x512xf32>
    %85 = arith.addf %84, %83 : vector<2x512xf32>
    %86 = arith.divf %84, %85 : vector<2x512xf32>
    %87 = arith.mulf %81, %86 : vector<2x512xf32>
    %c17_i32 = arith.constant 17 : i32
    %88 = tpu.dynamic_rotate %87 by %c17_i32 dim 1 : vector<2x512xf32>, i32 -> vector<2x512xf32>
    %c0_15 = arith.constant 0 : index
    %c0_16 = arith.constant 0 : index
    %c0_17 = arith.constant 0 : index
    %89 = vector.load %arg12[%c0_15, %c0_16, %c0_17] : memref<9x2x2xf32, #tpu.memory_space<vmem>>, vector<1x2x2xf32>
    %90 = vector.shape_cast %89 : vector<1x2x2xf32> to vector<2x2xf32>
    %91 = vector.extract_strided_slice %90 {offsets = [0, 0], sizes = [2, 1], strides = [1, 1]} : vector<2x2xf32> to vector<2x1xf32>
    %92 = vector.extract_strided_slice %88 {offsets = [0, 0], sizes = [1, 512], strides = [1, 1]} : vector<2x512xf32> to vector<1x512xf32>
    %93 = vector.broadcast %91 : vector<2x1xf32> to vector<2x512xf32>
    %94 = vector.broadcast %92 : vector<1x512xf32> to vector<2x512xf32>
    %95 = arith.mulf %93, %94 : vector<2x512xf32>
    %96 = vector.extract_strided_slice %90 {offsets = [0, 1], sizes = [2, 1], strides = [1, 1]} : vector<2x2xf32> to vector<2x1xf32>
    %97 = vector.extract_strided_slice %88 {offsets = [1, 0], sizes = [1, 512], strides = [1, 1]} : vector<2x512xf32> to vector<1x512xf32>
    %98 = vector.broadcast %96 : vector<2x1xf32> to vector<2x512xf32>
    %99 = vector.broadcast %97 : vector<1x512xf32> to vector<2x512xf32>
    %100 = arith.mulf %98, %99 : vector<2x512xf32>
    %101 = arith.addf %95, %100 : vector<2x512xf32>
    %c0_18 = arith.constant 0 : index
    %c0_19 = arith.constant 0 : index
    %102 = vector.load %arg2[%c0_18, %c0_19] : memref<9x512xf32, #tpu.memory_space<vmem>>, vector<1x512xf32>
    %103 = vector.broadcast %102 : vector<1x512xf32> to vector<2x512xf32>
    %104 = arith.mulf %101, %103 : vector<2x512xf32>
    %c16_i32 = arith.constant 16 : i32
    %105 = tpu.dynamic_rotate %87 by %c16_i32 dim 1 : vector<2x512xf32>, i32 -> vector<2x512xf32>
    %c1 = arith.constant 1 : index
    %c0_20 = arith.constant 0 : index
    %c0_21 = arith.constant 0 : index
    %106 = vector.load %arg12[%c1, %c0_20, %c0_21] : memref<9x2x2xf32, #tpu.memory_space<vmem>>, vector<1x2x2xf32>
    %107 = vector.shape_cast %106 : vector<1x2x2xf32> to vector<2x2xf32>
    %108 = vector.extract_strided_slice %107 {offsets = [0, 0], sizes = [2, 1], strides = [1, 1]} : vector<2x2xf32> to vector<2x1xf32>
    %109 = vector.extract_strided_slice %105 {offsets = [0, 0], sizes = [1, 512], strides = [1, 1]} : vector<2x512xf32> to vector<1x512xf32>
    %110 = vector.broadcast %108 : vector<2x1xf32> to vector<2x512xf32>
    %111 = vector.broadcast %109 : vector<1x512xf32> to vector<2x512xf32>
    %112 = arith.mulf %110, %111 : vector<2x512xf32>
    %113 = vector.extract_strided_slice %107 {offsets = [0, 1], sizes = [2, 1], strides = [1, 1]} : vector<2x2xf32> to vector<2x1xf32>
    %114 = vector.extract_strided_slice %105 {offsets = [1, 0], sizes = [1, 512], strides = [1, 1]} : vector<2x512xf32> to vector<1x512xf32>
    %115 = vector.broadcast %113 : vector<2x1xf32> to vector<2x512xf32>
    %116 = vector.broadcast %114 : vector<1x512xf32> to vector<2x512xf32>
    %117 = arith.mulf %115, %116 : vector<2x512xf32>
    %118 = arith.addf %112, %117 : vector<2x512xf32>
    %c1_22 = arith.constant 1 : index
    %c0_23 = arith.constant 0 : index
    %119 = vector.load %arg2[%c1_22, %c0_23] : memref<9x512xf32, #tpu.memory_space<vmem>>, vector<1x512xf32>
    %120 = vector.broadcast %119 : vector<1x512xf32> to vector<2x512xf32>
    %121 = arith.mulf %118, %120 : vector<2x512xf32>
    %122 = arith.addf %104, %121 : vector<2x512xf32>
    %c15_i32 = arith.constant 15 : i32
    %123 = tpu.dynamic_rotate %87 by %c15_i32 dim 1 : vector<2x512xf32>, i32 -> vector<2x512xf32>
    %c2 = arith.constant 2 : index
    %c0_24 = arith.constant 0 : index
    %c0_25 = arith.constant 0 : index
    %124 = vector.load %arg12[%c2, %c0_24, %c0_25] : memref<9x2x2xf32, #tpu.memory_space<vmem>>, vector<1x2x2xf32>
    %125 = vector.shape_cast %124 : vector<1x2x2xf32> to vector<2x2xf32>
    %126 = vector.extract_strided_slice %125 {offsets = [0, 0], sizes = [2, 1], strides = [1, 1]} : vector<2x2xf32> to vector<2x1xf32>
    %127 = vector.extract_strided_slice %123 {offsets = [0, 0], sizes = [1, 512], strides = [1, 1]} : vector<2x512xf32> to vector<1x512xf32>
    %128 = vector.broadcast %126 : vector<2x1xf32> to vector<2x512xf32>
    %129 = vector.broadcast %127 : vector<1x512xf32> to vector<2x512xf32>
    %130 = arith.mulf %128, %129 : vector<2x512xf32>
    %131 = vector.extract_strided_slice %125 {offsets = [0, 1], sizes = [2, 1], strides = [1, 1]} : vector<2x2xf32> to vector<2x1xf32>
    %132 = vector.extract_strided_slice %123 {offsets = [1, 0], sizes = [1, 512], strides = [1, 1]} : vector<2x512xf32> to vector<1x512xf32>
    %133 = vector.broadcast %131 : vector<2x1xf32> to vector<2x512xf32>
    %134 = vector.broadcast %132 : vector<1x512xf32> to vector<2x512xf32>
    %135 = arith.mulf %133, %134 : vector<2x512xf32>
    %136 = arith.addf %130, %135 : vector<2x512xf32>
    %c2_26 = arith.constant 2 : index
    %c0_27 = arith.constant 0 : index
    %137 = vector.load %arg2[%c2_26, %c0_27] : memref<9x512xf32, #tpu.memory_space<vmem>>, vector<1x512xf32>
    %138 = vector.broadcast %137 : vector<1x512xf32> to vector<2x512xf32>
    %139 = arith.mulf %136, %138 : vector<2x512xf32>
    %140 = arith.addf %122, %139 : vector<2x512xf32>
    %c1_i32 = arith.constant 1 : i32
    %141 = tpu.dynamic_rotate %87 by %c1_i32 dim 1 : vector<2x512xf32>, i32 -> vector<2x512xf32>
    %c3 = arith.constant 3 : index
    %c0_28 = arith.constant 0 : index
    %c0_29 = arith.constant 0 : index
    %142 = vector.load %arg12[%c3, %c0_28, %c0_29] : memref<9x2x2xf32, #tpu.memory_space<vmem>>, vector<1x2x2xf32>
    %143 = vector.shape_cast %142 : vector<1x2x2xf32> to vector<2x2xf32>
    %144 = vector.extract_strided_slice %143 {offsets = [0, 0], sizes = [2, 1], strides = [1, 1]} : vector<2x2xf32> to vector<2x1xf32>
    %145 = vector.extract_strided_slice %141 {offsets = [0, 0], sizes = [1, 512], strides = [1, 1]} : vector<2x512xf32> to vector<1x512xf32>
    %146 = vector.broadcast %144 : vector<2x1xf32> to vector<2x512xf32>
    %147 = vector.broadcast %145 : vector<1x512xf32> to vector<2x512xf32>
    %148 = arith.mulf %146, %147 : vector<2x512xf32>
    %149 = vector.extract_strided_slice %143 {offsets = [0, 1], sizes = [2, 1], strides = [1, 1]} : vector<2x2xf32> to vector<2x1xf32>
    %150 = vector.extract_strided_slice %141 {offsets = [1, 0], sizes = [1, 512], strides = [1, 1]} : vector<2x512xf32> to vector<1x512xf32>
    %151 = vector.broadcast %149 : vector<2x1xf32> to vector<2x512xf32>
    %152 = vector.broadcast %150 : vector<1x512xf32> to vector<2x512xf32>
    %153 = arith.mulf %151, %152 : vector<2x512xf32>
    %154 = arith.addf %148, %153 : vector<2x512xf32>
    %c3_30 = arith.constant 3 : index
    %c0_31 = arith.constant 0 : index
    %155 = vector.load %arg2[%c3_30, %c0_31] : memref<9x512xf32, #tpu.memory_space<vmem>>, vector<1x512xf32>
    %156 = vector.broadcast %155 : vector<1x512xf32> to vector<2x512xf32>
    %157 = arith.mulf %154, %156 : vector<2x512xf32>
    %158 = arith.addf %140, %157 : vector<2x512xf32>
    %c4 = arith.constant 4 : index
    %c0_32 = arith.constant 0 : index
    %c0_33 = arith.constant 0 : index
    %159 = vector.load %arg12[%c4, %c0_32, %c0_33] : memref<9x2x2xf32, #tpu.memory_space<vmem>>, vector<1x2x2xf32>
    %160 = vector.shape_cast %159 : vector<1x2x2xf32> to vector<2x2xf32>
    %161 = vector.extract_strided_slice %160 {offsets = [0, 0], sizes = [2, 1], strides = [1, 1]} : vector<2x2xf32> to vector<2x1xf32>
    %162 = vector.extract_strided_slice %87 {offsets = [0, 0], sizes = [1, 512], strides = [1, 1]} : vector<2x512xf32> to vector<1x512xf32>
    %163 = vector.broadcast %161 : vector<2x1xf32> to vector<2x512xf32>
    %164 = vector.broadcast %162 : vector<1x512xf32> to vector<2x512xf32>
    %165 = arith.mulf %163, %164 : vector<2x512xf32>
    %166 = vector.extract_strided_slice %160 {offsets = [0, 1], sizes = [2, 1], strides = [1, 1]} : vector<2x2xf32> to vector<2x1xf32>
    %167 = vector.extract_strided_slice %87 {offsets = [1, 0], sizes = [1, 512], strides = [1, 1]} : vector<2x512xf32> to vector<1x512xf32>
    %168 = vector.broadcast %166 : vector<2x1xf32> to vector<2x512xf32>
    %169 = vector.broadcast %167 : vector<1x512xf32> to vector<2x512xf32>
    %170 = arith.mulf %168, %169 : vector<2x512xf32>
    %171 = arith.addf %165, %170 : vector<2x512xf32>
    %c4_34 = arith.constant 4 : index
    %c0_35 = arith.constant 0 : index
    %172 = vector.load %arg2[%c4_34, %c0_35] : memref<9x512xf32, #tpu.memory_space<vmem>>, vector<1x512xf32>
    %173 = vector.broadcast %172 : vector<1x512xf32> to vector<2x512xf32>
    %174 = arith.mulf %171, %173 : vector<2x512xf32>
    %175 = arith.addf %158, %174 : vector<2x512xf32>
    %c511_i32 = arith.constant 511 : i32
    %176 = tpu.dynamic_rotate %87 by %c511_i32 dim 1 : vector<2x512xf32>, i32 -> vector<2x512xf32>
    %c5 = arith.constant 5 : index
    %c0_36 = arith.constant 0 : index
    %c0_37 = arith.constant 0 : index
    %177 = vector.load %arg12[%c5, %c0_36, %c0_37] : memref<9x2x2xf32, #tpu.memory_space<vmem>>, vector<1x2x2xf32>
    %178 = vector.shape_cast %177 : vector<1x2x2xf32> to vector<2x2xf32>
    %179 = vector.extract_strided_slice %178 {offsets = [0, 0], sizes = [2, 1], strides = [1, 1]} : vector<2x2xf32> to vector<2x1xf32>
    %180 = vector.extract_strided_slice %176 {offsets = [0, 0], sizes = [1, 512], strides = [1, 1]} : vector<2x512xf32> to vector<1x512xf32>
    %181 = vector.broadcast %179 : vector<2x1xf32> to vector<2x512xf32>
    %182 = vector.broadcast %180 : vector<1x512xf32> to vector<2x512xf32>
    %183 = arith.mulf %181, %182 : vector<2x512xf32>
    %184 = vector.extract_strided_slice %178 {offsets = [0, 1], sizes = [2, 1], strides = [1, 1]} : vector<2x2xf32> to vector<2x1xf32>
    %185 = vector.extract_strided_slice %176 {offsets = [1, 0], sizes = [1, 512], strides = [1, 1]} : vector<2x512xf32> to vector<1x512xf32>
    %186 = vector.broadcast %184 : vector<2x1xf32> to vector<2x512xf32>
    %187 = vector.broadcast %185 : vector<1x512xf32> to vector<2x512xf32>
    %188 = arith.mulf %186, %187 : vector<2x512xf32>
    %189 = arith.addf %183, %188 : vector<2x512xf32>
    %c5_38 = arith.constant 5 : index
    %c0_39 = arith.constant 0 : index
    %190 = vector.load %arg2[%c5_38, %c0_39] : memref<9x512xf32, #tpu.memory_space<vmem>>, vector<1x512xf32>
    %191 = vector.broadcast %190 : vector<1x512xf32> to vector<2x512xf32>
    %192 = arith.mulf %189, %191 : vector<2x512xf32>
    %193 = arith.addf %175, %192 : vector<2x512xf32>
    %c497_i32 = arith.constant 497 : i32
    %194 = tpu.dynamic_rotate %87 by %c497_i32 dim 1 : vector<2x512xf32>, i32 -> vector<2x512xf32>
    %c6 = arith.constant 6 : index
    %c0_40 = arith.constant 0 : index
    %c0_41 = arith.constant 0 : index
    %195 = vector.load %arg12[%c6, %c0_40, %c0_41] : memref<9x2x2xf32, #tpu.memory_space<vmem>>, vector<1x2x2xf32>
    %196 = vector.shape_cast %195 : vector<1x2x2xf32> to vector<2x2xf32>
    %197 = vector.extract_strided_slice %196 {offsets = [0, 0], sizes = [2, 1], strides = [1, 1]} : vector<2x2xf32> to vector<2x1xf32>
    %198 = vector.extract_strided_slice %194 {offsets = [0, 0], sizes = [1, 512], strides = [1, 1]} : vector<2x512xf32> to vector<1x512xf32>
    %199 = vector.broadcast %197 : vector<2x1xf32> to vector<2x512xf32>
    %200 = vector.broadcast %198 : vector<1x512xf32> to vector<2x512xf32>
    %201 = arith.mulf %199, %200 : vector<2x512xf32>
    %202 = vector.extract_strided_slice %196 {offsets = [0, 1], sizes = [2, 1], strides = [1, 1]} : vector<2x2xf32> to vector<2x1xf32>
    %203 = vector.extract_strided_slice %194 {offsets = [1, 0], sizes = [1, 512], strides = [1, 1]} : vector<2x512xf32> to vector<1x512xf32>
    %204 = vector.broadcast %202 : vector<2x1xf32> to vector<2x512xf32>
    %205 = vector.broadcast %203 : vector<1x512xf32> to vector<2x512xf32>
    %206 = arith.mulf %204, %205 : vector<2x512xf32>
    %207 = arith.addf %201, %206 : vector<2x512xf32>
    %c6_42 = arith.constant 6 : index
    %c0_43 = arith.constant 0 : index
    %208 = vector.load %arg2[%c6_42, %c0_43] : memref<9x512xf32, #tpu.memory_space<vmem>>, vector<1x512xf32>
    %209 = vector.broadcast %208 : vector<1x512xf32> to vector<2x512xf32>
    %210 = arith.mulf %207, %209 : vector<2x512xf32>
    %211 = arith.addf %193, %210 : vector<2x512xf32>
    %c496_i32 = arith.constant 496 : i32
    %212 = tpu.dynamic_rotate %87 by %c496_i32 dim 1 : vector<2x512xf32>, i32 -> vector<2x512xf32>
    %c7 = arith.constant 7 : index
    %c0_44 = arith.constant 0 : index
    %c0_45 = arith.constant 0 : index
    %213 = vector.load %arg12[%c7, %c0_44, %c0_45] : memref<9x2x2xf32, #tpu.memory_space<vmem>>, vector<1x2x2xf32>
    %214 = vector.shape_cast %213 : vector<1x2x2xf32> to vector<2x2xf32>
    %215 = vector.extract_strided_slice %214 {offsets = [0, 0], sizes = [2, 1], strides = [1, 1]} : vector<2x2xf32> to vector<2x1xf32>
    %216 = vector.extract_strided_slice %212 {offsets = [0, 0], sizes = [1, 512], strides = [1, 1]} : vector<2x512xf32> to vector<1x512xf32>
    %217 = vector.broadcast %215 : vector<2x1xf32> to vector<2x512xf32>
    %218 = vector.broadcast %216 : vector<1x512xf32> to vector<2x512xf32>
    %219 = arith.mulf %217, %218 : vector<2x512xf32>
    %220 = vector.extract_strided_slice %214 {offsets = [0, 1], sizes = [2, 1], strides = [1, 1]} : vector<2x2xf32> to vector<2x1xf32>
    %221 = vector.extract_strided_slice %212 {offsets = [1, 0], sizes = [1, 512], strides = [1, 1]} : vector<2x512xf32> to vector<1x512xf32>
    %222 = vector.broadcast %220 : vector<2x1xf32> to vector<2x512xf32>
    %223 = vector.broadcast %221 : vector<1x512xf32> to vector<2x512xf32>
    %224 = arith.mulf %222, %223 : vector<2x512xf32>
    %225 = arith.addf %219, %224 : vector<2x512xf32>
    %c7_46 = arith.constant 7 : index
    %c0_47 = arith.constant 0 : index
    %226 = vector.load %arg2[%c7_46, %c0_47] : memref<9x512xf32, #tpu.memory_space<vmem>>, vector<1x512xf32>
    %227 = vector.broadcast %226 : vector<1x512xf32> to vector<2x512xf32>
    %228 = arith.mulf %225, %227 : vector<2x512xf32>
    %229 = arith.addf %211, %228 : vector<2x512xf32>
    %c495_i32 = arith.constant 495 : i32
    %230 = tpu.dynamic_rotate %87 by %c495_i32 dim 1 : vector<2x512xf32>, i32 -> vector<2x512xf32>
    %c8 = arith.constant 8 : index
    %c0_48 = arith.constant 0 : index
    %c0_49 = arith.constant 0 : index
    %231 = vector.load %arg12[%c8, %c0_48, %c0_49] : memref<9x2x2xf32, #tpu.memory_space<vmem>>, vector<1x2x2xf32>
    %232 = vector.shape_cast %231 : vector<1x2x2xf32> to vector<2x2xf32>
    %233 = vector.extract_strided_slice %232 {offsets = [0, 0], sizes = [2, 1], strides = [1, 1]} : vector<2x2xf32> to vector<2x1xf32>
    %234 = vector.extract_strided_slice %230 {offsets = [0, 0], sizes = [1, 512], strides = [1, 1]} : vector<2x512xf32> to vector<1x512xf32>
    %235 = vector.broadcast %233 : vector<2x1xf32> to vector<2x512xf32>
    %236 = vector.broadcast %234 : vector<1x512xf32> to vector<2x512xf32>
    %237 = arith.mulf %235, %236 : vector<2x512xf32>
    %238 = vector.extract_strided_slice %232 {offsets = [0, 1], sizes = [2, 1], strides = [1, 1]} : vector<2x2xf32> to vector<2x1xf32>
    %239 = vector.extract_strided_slice %230 {offsets = [1, 0], sizes = [1, 512], strides = [1, 1]} : vector<2x512xf32> to vector<1x512xf32>
    %240 = vector.broadcast %238 : vector<2x1xf32> to vector<2x512xf32>
    %241 = vector.broadcast %239 : vector<1x512xf32> to vector<2x512xf32>
    %242 = arith.mulf %240, %241 : vector<2x512xf32>
    %243 = arith.addf %237, %242 : vector<2x512xf32>
    %c8_50 = arith.constant 8 : index
    %c0_51 = arith.constant 0 : index
    %244 = vector.load %arg2[%c8_50, %c0_51] : memref<9x512xf32, #tpu.memory_space<vmem>>, vector<1x512xf32>
    %245 = vector.broadcast %244 : vector<1x512xf32> to vector<2x512xf32>
    %246 = arith.mulf %243, %245 : vector<2x512xf32>
    %247 = arith.addf %229, %246 : vector<2x512xf32>
    %c0_52 = arith.constant 0 : index
    %c0_53 = arith.constant 0 : index
    %248 = vector.load %arg13[%c0_52, %c0_53] : memref<2x1xf32, #tpu.memory_space<vmem>>, vector<2x1xf32>
    %249 = vector.broadcast %248 : vector<2x1xf32> to vector<2x512xf32>
    %250 = arith.addf %247, %249 : vector<2x512xf32>
    %251 = arith.negf %250 : vector<2x512xf32>
    %252 = math.exp %251 : vector<2x512xf32>
    %cst_54 = arith.constant 1.000000e+00 : f32
    %253 = vector.broadcast %cst_54 : f32 to vector<2x512xf32>
    %254 = arith.addf %253, %252 : vector<2x512xf32>
    %255 = arith.divf %253, %254 : vector<2x512xf32>
    %256 = arith.mulf %250, %255 : vector<2x512xf32>
    %257 = arith.addf %33, %256 : vector<2x512xf32>
    %c0_55 = arith.constant 0 : index
    %c0_56 = arith.constant 0 : index
    %258 = vector.load %arg7[%c0_55, %c0_56] : memref<4x2xf32, #tpu.memory_space<vmem>>, vector<4x2xf32>
    %259 = vector.extract_strided_slice %258 {offsets = [0, 0], sizes = [4, 1], strides = [1, 1]} : vector<4x2xf32> to vector<4x1xf32>
    %260 = vector.extract_strided_slice %257 {offsets = [0, 0], sizes = [1, 512], strides = [1, 1]} : vector<2x512xf32> to vector<1x512xf32>
    %261 = vector.broadcast %259 : vector<4x1xf32> to vector<4x512xf32>
    %262 = vector.broadcast %260 : vector<1x512xf32> to vector<4x512xf32>
    %263 = arith.mulf %261, %262 : vector<4x512xf32>
    %264 = vector.extract_strided_slice %258 {offsets = [0, 1], sizes = [4, 1], strides = [1, 1]} : vector<4x2xf32> to vector<4x1xf32>
    %265 = vector.extract_strided_slice %257 {offsets = [1, 0], sizes = [1, 512], strides = [1, 1]} : vector<2x512xf32> to vector<1x512xf32>
    %266 = vector.broadcast %264 : vector<4x1xf32> to vector<4x512xf32>
    %267 = vector.broadcast %265 : vector<1x512xf32> to vector<4x512xf32>
    %268 = arith.mulf %266, %267 : vector<4x512xf32>
    %269 = arith.addf %263, %268 : vector<4x512xf32>
    %c0_57 = arith.constant 0 : index
    %c0_58 = arith.constant 0 : index
    %270 = vector.load %arg8[%c0_57, %c0_58] : memref<4x2xf32, #tpu.memory_space<vmem>>, vector<4x2xf32>
    %271 = vector.extract_strided_slice %270 {offsets = [0, 0], sizes = [4, 1], strides = [1, 1]} : vector<4x2xf32> to vector<4x1xf32>
    %272 = vector.extract_strided_slice %66 {offsets = [0, 0], sizes = [1, 512], strides = [1, 1]} : vector<2x512xf32> to vector<1x512xf32>
    %273 = vector.broadcast %271 : vector<4x1xf32> to vector<4x512xf32>
    %274 = vector.broadcast %272 : vector<1x512xf32> to vector<4x512xf32>
    %275 = arith.mulf %273, %274 : vector<4x512xf32>
    %276 = vector.extract_strided_slice %270 {offsets = [0, 1], sizes = [4, 1], strides = [1, 1]} : vector<4x2xf32> to vector<4x1xf32>
    %277 = vector.extract_strided_slice %66 {offsets = [1, 0], sizes = [1, 512], strides = [1, 1]} : vector<2x512xf32> to vector<1x512xf32>
    %278 = vector.broadcast %276 : vector<4x1xf32> to vector<4x512xf32>
    %279 = vector.broadcast %277 : vector<1x512xf32> to vector<4x512xf32>
    %280 = arith.mulf %278, %279 : vector<4x512xf32>
    %281 = arith.addf %275, %280 : vector<4x512xf32>
    %282 = arith.addf %269, %281 : vector<4x512xf32>
    %c0_59 = arith.constant 0 : index
    %c0_60 = arith.constant 0 : index
    %283 = vector.load %arg9[%c0_59, %c0_60] : memref<4x1xf32, #tpu.memory_space<vmem>>, vector<4x1xf32>
    %284 = vector.broadcast %283 : vector<4x1xf32> to vector<4x512xf32>
    %285 = arith.addf %282, %284 : vector<4x512xf32>
    %286 = arith.negf %285 : vector<4x512xf32>
    %287 = math.exp %286 : vector<4x512xf32>
    %cst_61 = arith.constant 1.000000e+00 : f32
    %288 = vector.broadcast %cst_61 : f32 to vector<4x512xf32>
    %289 = arith.addf %288, %287 : vector<4x512xf32>
    %290 = arith.divf %288, %289 : vector<4x512xf32>
    %291 = arith.mulf %285, %290 : vector<4x512xf32>
    %c0_62 = arith.constant 0 : index
    %c0_63 = arith.constant 0 : index
    %292 = vector.load %arg14[%c0_62, %c0_63] : memref<4x512xf32, #tpu.memory_space<vmem>>, vector<4x512xf32>
    tpu.vector_store %arg14[%c0_62, %c0_63], %291 {strides = array<i32>} : memref<4x512xf32, #tpu.memory_space<vmem>>, vector<4x512xf32>,
    return
  }
  func.func @transform_0(%arg0: i32) -> (i32, i32) {
    %c0_i32 = arith.constant 0 : i32
    %c0_i32_0 = arith.constant 0 : i32
    return %c0_i32, %arg0 : i32, i32
  }
  func.func @transform_1(%arg0: i32) -> (i32, i32) {
    %c0_i32 = arith.constant 0 : i32
    %c0_i32_0 = arith.constant 0 : i32
    %c0_i32_1 = arith.constant 0 : i32
    return %c0_i32, %c0_i32_0 : i32, i32
  }
  func.func @transform_2(%arg0: i32) -> (i32, i32) {
    %c0_i32 = arith.constant 0 : i32
    %c0_i32_0 = arith.constant 0 : i32
    %c0_i32_1 = arith.constant 0 : i32
    return %c0_i32, %c0_i32_0 : i32, i32
  }
  func.func @transform_3(%arg0: i32) -> (i32, i32) {
    %c0_i32 = arith.constant 0 : i32
    %c0_i32_0 = arith.constant 0 : i32
    %c0_i32_1 = arith.constant 0 : i32
    return %c0_i32, %c0_i32_0 : i32, i32
  }
  func.func @transform_4(%arg0: i32) -> (i32, i32) {
    %c0_i32 = arith.constant 0 : i32
    %c0_i32_0 = arith.constant 0 : i32
    %c0_i32_1 = arith.constant 0 : i32
    return %c0_i32, %c0_i32_0 : i32, i32
  }
  func.func @transform_5(%arg0: i32) -> (i32, i32) {
    %c0_i32 = arith.constant 0 : i32
    %c0_i32_0 = arith.constant 0 : i32
    %c0_i32_1 = arith.constant 0 : i32
    return %c0_i32, %c0_i32_0 : i32, i32
  }
  func.func @transform_6(%arg0: i32) -> (i32, i32) {
    %c0_i32 = arith.constant 0 : i32
    %c0_i32_0 = arith.constant 0 : i32
    %c0_i32_1 = arith.constant 0 : i32
    return %c0_i32, %c0_i32_0 : i32, i32
  }
  func.func @transform_7(%arg0: i32) -> (i32, i32) {
    %c0_i32 = arith.constant 0 : i32
    %c0_i32_0 = arith.constant 0 : i32
    %c0_i32_1 = arith.constant 0 : i32
    return %c0_i32, %c0_i32_0 : i32, i32
  }
  func.func @transform_8(%arg0: i32) -> (i32, i32) {
    %c0_i32 = arith.constant 0 : i32
    %c0_i32_0 = arith.constant 0 : i32
    %c0_i32_1 = arith.constant 0 : i32
    return %c0_i32, %c0_i32_0 : i32, i32
  }
  func.func @transform_9(%arg0: i32) -> (i32, i32) {
    %c0_i32 = arith.constant 0 : i32
    %c0_i32_0 = arith.constant 0 : i32
    %c0_i32_1 = arith.constant 0 : i32
    return %c0_i32, %c0_i32_0 : i32, i32
  }
  func.func @transform_10(%arg0: i32) -> (i32, i32) {
    %c0_i32 = arith.constant 0 : i32
    %c0_i32_0 = arith.constant 0 : i32
    %c0_i32_1 = arith.constant 0 : i32
    return %c0_i32, %c0_i32_0 : i32, i32
  }
  func.func @transform_11(%arg0: i32) -> (i32, i32, i32) {
    %c0_i32 = arith.constant 0 : i32
    %c0_i32_0 = arith.constant 0 : i32
    %c0_i32_1 = arith.constant 0 : i32
    %c0_i32_2 = arith.constant 0 : i32
    return %c0_i32, %c0_i32_0, %c0_i32_1 : i32, i32, i32
  }
  func.func @transform_12(%arg0: i32) -> (i32, i32) {
    %c0_i32 = arith.constant 0 : i32
    %c0_i32_0 = arith.constant 0 : i32
    %c0_i32_1 = arith.constant 0 : i32
    return %c0_i32, %c0_i32_0 : i32, i32
  }
  func.func @transform_13(%arg0: i32) -> (i32, i32) {
    %c0_i32 = arith.constant 0 : i32
    %c0_i32_0 = arith.constant 0 : i32
    return %c0_i32, %arg0 : i32, i32
  }
}

</mosaic_0001>

<llo_original>
// kernel: c3_forward.1
$region0: #{c3_forward.1}
  #allocation0 [shape = 'u32[]', space=smem, size = 0x4, offset = 0x4, fixed_abs, tag = 'smem constant byte address 0x4 - core index']
  #allocation1 [shape = 'u32[72,128]{1,0:T(1,128)}', space=vmem, size = 0x9000, scoped, tag = 'internal scratch']
  %s0 = inlined_call_operand.vmem [shape: f32[4,512], index: 0, kind: input, shape index: {}]
  %s1 = inlined_call_operand.vmem [shape: f32[9,512], index: 1, kind: input, shape index: {}]
  %s2 = inlined_call_operand.vmem [shape: f32[2,4], index: 2, kind: input, shape index: {}]
  %s3 = inlined_call_operand.vmem [shape: f32[2,1], index: 3, kind: input, shape index: {}]
  %s4 = inlined_call_operand.vmem [shape: f32[2,4], index: 4, kind: input, shape index: {}]
  %s5 = inlined_call_operand.vmem [shape: f32[2,1], index: 5, kind: input, shape index: {}]
  %s6 = inlined_call_operand.vmem [shape: f32[4,2], index: 6, kind: input, shape index: {}]
  %s7 = inlined_call_operand.vmem [shape: f32[4,2], index: 7, kind: input, shape index: {}]
  %s8 = inlined_call_operand.vmem [shape: f32[4,1], index: 8, kind: input, shape index: {}]
  %s9 = inlined_call_operand.vmem [shape: f32[2,2], index: 9, kind: input, shape index: {}]
  %s10 = inlined_call_operand.vmem [shape: f32[2,1], index: 10, kind: input, shape index: {}]
  %s11 = inlined_call_operand.vmem [shape: f32[9,2,2], index: 11, kind: input, shape index: {}]
  %s12 = inlined_call_operand.vmem [shape: f32[2,1], index: 12, kind: input, shape index: {}]
  %s13 = inlined_call_operand.vmem [shape: f32[4,512], index: 13, kind: output, shape index: {}]
  %s14 = sld [smem:[#allocation0]]
  $region62: #{c3_forward.1} parent=0
    _
  %s16 = ssub.s32 1, %s14
  %s17 = scalar_select 0, %s16, %s14
  // Predicated region
  $region2: #{c3_forward.1} parent=0 // pred_check
    _
  $region3: #{c3_forward.1} parent=0 // pred_check_branch
    %19 = sbr.rel (0) target = $region5
  $region4: #{c3_forward.1} parent=0 // pred_region
    _
  $region5: #{c3_forward.1} parent=0 // pred_fallthru
    _
  // Predicated region
  $region6: #{c3_forward.1} parent=0 // pred_check
    _
  $region7: #{c3_forward.1} parent=0 // pred_check_branch
    %21 = sbr.rel (0) target = $region9
  $region8: #{c3_forward.1} parent=0 // pred_region
    _
  $region9: #{c3_forward.1} parent=0 // pred_fallthru
    _
  // Predicated region
  $region10: #{c3_forward.1} parent=0 // pred_check
    _
  $region11: #{c3_forward.1} parent=0 // pred_check_branch
    %23 = sbr.rel (0) target = $region13
  $region12: #{c3_forward.1} parent=0 // pred_region
    _
  $region13: #{c3_forward.1} parent=0 // pred_fallthru
    _
  // Predicated region
  $region14: #{c3_forward.1} parent=0 // pred_check
    _
  $region15: #{c3_forward.1} parent=0 // pred_check_branch
    %25 = sbr.rel (0) target = $region17
  $region16: #{c3_forward.1} parent=0 // pred_region
    _
  $region17: #{c3_forward.1} parent=0 // pred_fallthru
    _
  // Predicated region
  $region18: #{c3_forward.1} parent=0 // pred_check
    _
  $region19: #{c3_forward.1} parent=0 // pred_check_branch
    %27 = sbr.rel (0) target = $region21
  $region20: #{c3_forward.1} parent=0 // pred_region
    _
  $region21: #{c3_forward.1} parent=0 // pred_fallthru
    _
  // Predicated region
  $region22: #{c3_forward.1} parent=0 // pred_check
    _
  $region23: #{c3_forward.1} parent=0 // pred_check_branch
    %29 = sbr.rel (0) target = $region25
  $region24: #{c3_forward.1} parent=0 // pred_region
    _
  $region25: #{c3_forward.1} parent=0 // pred_fallthru
    _
  // Predicated region
  $region26: #{c3_forward.1} parent=0 // pred_check
    _
  $region27: #{c3_forward.1} parent=0 // pred_check_branch
    %31 = sbr.rel (0) target = $region29
  $region28: #{c3_forward.1} parent=0 // pred_region
    _
  $region29: #{c3_forward.1} parent=0 // pred_fallthru
    _
  // Predicated region
  $region30: #{c3_forward.1} parent=0 // pred_check
    _
  $region31: #{c3_forward.1} parent=0 // pred_check_branch
    %33 = sbr.rel (0) target = $region33
  $region32: #{c3_forward.1} parent=0 // pred_region
    _
  $region33: #{c3_forward.1} parent=0 // pred_fallthru
    _
  // Predicated region
  $region34: #{c3_forward.1} parent=0 // pred_check
    _
  $region35: #{c3_forward.1} parent=0 // pred_check_branch
    %35 = sbr.rel (0) target = $region37
  $region36: #{c3_forward.1} parent=0 // pred_region
    _
  $region37: #{c3_forward.1} parent=0 // pred_fallthru
    _
  // Predicated region
  $region38: #{c3_forward.1} parent=0 // pred_check
    _
  $region39: #{c3_forward.1} parent=0 // pred_check_branch
    %37 = sbr.rel (0) target = $region41
  $region40: #{c3_forward.1} parent=0 // pred_region
    _
  $region41: #{c3_forward.1} parent=0 // pred_fallthru
    _
  // Predicated region
  $region42: #{c3_forward.1} parent=0 // pred_check
    _
  $region43: #{c3_forward.1} parent=0 // pred_check_branch
    %39 = sbr.rel (0) target = $region45
  $region44: #{c3_forward.1} parent=0 // pred_region
    _
  $region45: #{c3_forward.1} parent=0 // pred_fallthru
    _
  // Predicated region
  $region46: #{c3_forward.1} parent=0 // pred_check
    _
  $region47: #{c3_forward.1} parent=0 // pred_check_branch
    %41 = sbr.rel (0) target = $region49
  $region48: #{c3_forward.1} parent=0 // pred_region
    _
  $region49: #{c3_forward.1} parent=0 // pred_fallthru
    _
  // Predicated region
  $region50: #{c3_forward.1} parent=0 // pred_check
    _
  $region51: #{c3_forward.1} parent=0 // pred_check_branch
    %43 = sbr.rel (0) target = $region53
  $region52: #{c3_forward.1} parent=0 // pred_region
    _
  $region53: #{c3_forward.1} parent=0 // pred_fallthru
    _
  %v44 = vld [vmem:[%s0] sm:$0xff]
  %v45 = vld [vmem:[%s0 + $0x8] sm:$0xff]
  %v46 = vld [vmem:[%s2] sm:$0x3]
  %48 = vset.pattern.permute.xlu0 0
  %49 = vperm.xlu0 %48, %v46
  %v50 = vpop.permute.xlu0 %49
  %v54 = vperm.slane %v44, 0
  %v55 = vperm.slane %v44, 4
  %v56 = vperm.slane %v45, 0
  %v57 = vperm.slane %v45, 4
  %v62 = vperm.slane %v54, 0
  %v63 = vperm.slane %v55, 0
  %v64 = vperm.slane %v56, 0
  %v65 = vperm.slane %v57, 0
  %v66 = vmul.f32 %v50, %v62
  %v67 = vmul.f32 %v50, %v63
  %v68 = vmul.f32 %v50, %v64
  %v69 = vmul.f32 %v50, %v65
  %70 = vset.pattern.permute.xlu0 1
  %71 = vperm.xlu0 %70, %v46
  %v72 = vpop.permute.xlu0 %71
  %v74 = vperm.slane %v44, 1
  %v75 = vperm.slane %v44, 5
  %v76 = vperm.slane %v45, 1
  %v77 = vperm.slane %v45, 5
  %v82 = vperm.slane %v74, 1
  %v83 = vperm.slane %v75, 1
  %v84 = vperm.slane %v76, 1
  %v85 = vperm.slane %v77, 1
  %v86 = vmul.f32 %v72, %v82
  %v87 = vmul.f32 %v72, %v83
  %v88 = vmul.f32 %v72, %v84
  %v89 = vmul.f32 %v72, %v85
  %v90 = vadd.f32 %v66, %v86
  %v91 = vadd.f32 %v67, %v87
  %v92 = vadd.f32 %v68, %v88
  %v93 = vadd.f32 %v69, %v89
  %94 = vset.pattern.permute.xlu0 2
  %95 = vperm.xlu0 %94, %v46
  %v96 = vpop.permute.xlu0 %95
  %v98 = vperm.slane %v44, 2
  %v99 = vperm.slane %v44, 6
  %v100 = vperm.slane %v45, 2
  %v101 = vperm.slane %v45, 6
  %v106 = vperm.slane %v98, 2
  %v107 = vperm.slane %v99, 2
  %v108 = vperm.slane %v100, 2
  %v109 = vperm.slane %v101, 2
  %v110 = vmul.f32 %v96, %v106
  %v111 = vmul.f32 %v96, %v107
  %v112 = vmul.f32 %v96, %v108
  %v113 = vmul.f32 %v96, %v109
  %v114 = vadd.f32 %v90, %v110
  %v115 = vadd.f32 %v91, %v111
  %v116 = vadd.f32 %v92, %v112
  %v117 = vadd.f32 %v93, %v113
  %118 = vset.pattern.permute.xlu0 3
  %119 = vperm.xlu0 %118, %v46
  %v120 = vpop.permute.xlu0 %119
  %v122 = vperm.slane %v44, 3
  %v123 = vperm.slane %v44, 7
  %v124 = vperm.slane %v45, 3
  %v125 = vperm.slane %v45, 7
  %v130 = vperm.slane %v122, 3
  %v131 = vperm.slane %v123, 3
  %v132 = vperm.slane %v124, 3
  %v133 = vperm.slane %v125, 3
  %v134 = vmul.f32 %v120, %v130
  %v135 = vmul.f32 %v120, %v131
  %v136 = vmul.f32 %v120, %v132
  %v137 = vmul.f32 %v120, %v133
  %v138 = vadd.f32 %v114, %v134
  %v139 = vadd.f32 %v115, %v135
  %v140 = vadd.f32 %v116, %v136
  %v141 = vadd.f32 %v117, %v137
  %v142 = vld [vmem:[%s3] sm:$0x3]
  %144 = vset.pattern.permute.xlu0 0
  %145 = vperm.xlu0 %144, %v142
  %v146 = vpop.permute.xlu0 %145
  %v148 = vadd.f32 %v138, %v146
  %v149 = vadd.f32 %v139, %v146
  %v150 = vadd.f32 %v140, %v146
  %v151 = vadd.f32 %v141, %v146
  %v152 = vxor.u32 %v148, 2147483648
  %v153 = vxor.u32 %v149, 2147483648
  %v154 = vxor.u32 %v150, 2147483648
  %v155 = vxor.u32 %v151, 2147483648
  %v156 = vmul.f32 %v152, 1.442695
  %v157 = vpow.pop %v156
  %v158 = vmul.f32 %v153, 1.442695
  %v159 = vpow.pop %v158
  %v160 = vmul.f32 %v154, 1.442695
  %v161 = vpow.pop %v160
  %v162 = vmul.f32 %v155, 1.442695
  %v163 = vpow.pop %v162
  %v164 = vadd.f32 %v157, 1.0
  %v165 = vadd.f32 %v159, 1.0
  %v166 = vadd.f32 %v161, 1.0
  %v167 = vadd.f32 %v163, 1.0
  %v168 = vrcp.pop %v164
  %v169 = vmul.f32 %v164, %v168
  %v170 = vsub.f32 1.0, %v169
  %v171 = vmul.f32 %v168, %v170
  %v172 = vadd.f32 %v168, %v171
  %vm173 = vweird.f32 %v164
  %vm174 = vweird.f32 %v168
  %vm175 = vmor %vm173, %vm174
  %v176 = vsel %vm175, %v168, %v172
  %v177 = vand.u32 2147483647, %v164
  %vm178 = vcmp.eq.f32.partialorder %v177, 8.507059e+37
  %v179 = vand.u32 %v164, 2147483648
  %v180 = vor.u32 1.1754944e-38, %v179
  %v181 = vsel %vm178, %v180, %v176
  %v182 = vmul.f32 1.0, %v181
  %v183 = vrcp.pop %v165
  %v184 = vmul.f32 %v165, %v183
  %v185 = vsub.f32 1.0, %v184
  %v186 = vmul.f32 %v183, %v185
  %v187 = vadd.f32 %v183, %v186
  %vm188 = vweird.f32 %v165
  %vm189 = vweird.f32 %v183
  %vm190 = vmor %vm188, %vm189
  %v191 = vsel %vm190, %v183, %v187
  %v192 = vand.u32 2147483647, %v165
  %vm193 = vcmp.eq.f32.partialorder %v192, 8.507059e+37
  %v194 = vand.u32 %v165, 2147483648
  %v195 = vor.u32 1.1754944e-38, %v194
  %v196 = vsel %vm193, %v195, %v191
  %v197 = vmul.f32 1.0, %v196
  %v198 = vrcp.pop %v166
  %v199 = vmul.f32 %v166, %v198
  %v200 = vsub.f32 1.0, %v199
  %v201 = vmul.f32 %v198, %v200
  %v202 = vadd.f32 %v198, %v201
  %vm203 = vweird.f32 %v166
  %vm204 = vweird.f32 %v198
  %vm205 = vmor %vm203, %vm204
  %v206 = vsel %vm205, %v198, %v202
  %v207 = vand.u32 2147483647, %v166
  %vm208 = vcmp.eq.f32.partialorder %v207, 8.507059e+37
  %v209 = vand.u32 %v166, 2147483648
  %v210 = vor.u32 1.1754944e-38, %v209
  %v211 = vsel %vm208, %v210, %v206
  %v212 = vmul.f32 1.0, %v211
  %v213 = vrcp.pop %v167
  %v214 = vmul.f32 %v167, %v213
  %v215 = vsub.f32 1.0, %v214
  %v216 = vmul.f32 %v213, %v215
  %v217 = vadd.f32 %v213, %v216
  %vm218 = vweird.f32 %v167
  %vm219 = vweird.f32 %v213
  %vm220 = vmor %vm218, %vm219
  %v221 = vsel %vm220, %v213, %v217
  %v222 = vand.u32 2147483647, %v167
  %vm223 = vcmp.eq.f32.partialorder %v222, 8.507059e+37
  %v224 = vand.u32 %v167, 2147483648
  %v225 = vor.u32 1.1754944e-38, %v224
  %v226 = vsel %vm223, %v225, %v221
  %v227 = vmul.f32 1.0, %v226
  %v228 = vmul.f32 %v148, %v182
  %v229 = vmul.f32 %v149, %v197
  %v230 = vmul.f32 %v150, %v212
  %v231 = vmul.f32 %v151, %v227
  %v232 = vld [vmem:[%s4] sm:$0x3]
  %234 = vset.pattern.permute.xlu0 0
  %235 = vperm.xlu0 %234, %v232
  %v236 = vpop.permute.xlu0 %235
  %v238 = vmul.f32 %v236, %v62
  %v239 = vmul.f32 %v236, %v63
  %v240 = vmul.f32 %v236, %v64
  %v241 = vmul.f32 %v236, %v65
  %242 = vset.pattern.permute.xlu0 1
  %243 = vperm.xlu0 %242, %v232
  %v244 = vpop.permute.xlu0 %243
  %v246 = vmul.f32 %v244, %v82
  %v247 = vmul.f32 %v244, %v83
  %v248 = vmul.f32 %v244, %v84
  %v249 = vmul.f32 %v244, %v85
  %v250 = vadd.f32 %v238, %v246
  %v251 = vadd.f32 %v239, %v247
  %v252 = vadd.f32 %v240, %v248
  %v253 = vadd.f32 %v241, %v249
  %254 = vset.pattern.permute.xlu0 2
  %255 = vperm.xlu0 %254, %v232
  %v256 = vpop.permute.xlu0 %255
  %v258 = vmul.f32 %v256, %v106
  %v259 = vmul.f32 %v256, %v107
  %v260 = vmul.f32 %v256, %v108
  %v261 = vmul.f32 %v256, %v109
  %v262 = vadd.f32 %v250, %v258
  %v263 = vadd.f32 %v251, %v259
  %v264 = vadd.f32 %v252, %v260
  %v265 = vadd.f32 %v253, %v261
  %266 = vset.pattern.permute.xlu0 3
  %267 = vperm.xlu0 %266, %v232
  %v268 = vpop.permute.xlu0 %267
  %v270 = vmul.f32 %v268, %v130
  %v271 = vmul.f32 %v268, %v131
  %v272 = vmul.f32 %v268, %v132
  %v273 = vmul.f32 %v268, %v133
  %v274 = vadd.f32 %v262, %v270
  %v275 = vadd.f32 %v263, %v271
  %v276 = vadd.f32 %v264, %v272
  %v277 = vadd.f32 %v265, %v273
  %v278 = vld [vmem:[%s5] sm:$0x3]
  %280 = vset.pattern.permute.xlu0 0
  %281 = vperm.xlu0 %280, %v278
  %v282 = vpop.permute.xlu0 %281
  %v284 = vadd.f32 %v274, %v282
  %v285 = vadd.f32 %v275, %v282
  %v286 = vadd.f32 %v276, %v282
  %v287 = vadd.f32 %v277, %v282
  %v288 = vxor.u32 %v284, 2147483648
  %v289 = vxor.u32 %v285, 2147483648
  %v290 = vxor.u32 %v286, 2147483648
  %v291 = vxor.u32 %v287, 2147483648
  %v292 = vmul.f32 %v288, 1.442695
  %v293 = vpow.pop %v292
  %v294 = vmul.f32 %v289, 1.442695
  %v295 = vpow.pop %v294
  %v296 = vmul.f32 %v290, 1.442695
  %v297 = vpow.pop %v296
  %v298 = vmul.f32 %v291, 1.442695
  %v299 = vpow.pop %v298
  %v300 = vadd.f32 %v293, 1.0
  %v301 = vadd.f32 %v295, 1.0
  %v302 = vadd.f32 %v297, 1.0
  %v303 = vadd.f32 %v299, 1.0
  %v304 = vrcp.pop %v300
  %v305 = vmul.f32 %v300, %v304
  %v306 = vsub.f32 1.0, %v305
  %v307 = vmul.f32 %v304, %v306
  %v308 = vadd.f32 %v304, %v307
  %vm309 = vweird.f32 %v300
  %vm310 = vweird.f32 %v304
  %vm311 = vmor %vm309, %vm310
  %v312 = vsel %vm311, %v304, %v308
  %v313 = vand.u32 2147483647, %v300
  %vm314 = vcmp.eq.f32.partialorder %v313, 8.507059e+37
  %v315 = vand.u32 %v300, 2147483648
  %v316 = vor.u32 1.1754944e-38, %v315
  %v317 = vsel %vm314, %v316, %v312
  %v318 = vmul.f32 1.0, %v317
  %v319 = vrcp.pop %v301
  %v320 = vmul.f32 %v301, %v319
  %v321 = vsub.f32 1.0, %v320
  %v322 = vmul.f32 %v319, %v321
  %v323 = vadd.f32 %v319, %v322
  %vm324 = vweird.f32 %v301
  %vm325 = vweird.f32 %v319
  %vm326 = vmor %vm324, %vm325
  %v327 = vsel %vm326, %v319, %v323
  %v328 = vand.u32 2147483647, %v301
  %vm329 = vcmp.eq.f32.partialorder %v328, 8.507059e+37
  %v330 = vand.u32 %v301, 2147483648
  %v331 = vor.u32 1.1754944e-38, %v330
  %v332 = vsel %vm329, %v331, %v327
  %v333 = vmul.f32 1.0, %v332
  %v334 = vrcp.pop %v302
  %v335 = vmul.f32 %v302, %v334
  %v336 = vsub.f32 1.0, %v335
  %v337 = vmul.f32 %v334, %v336
  %v338 = vadd.f32 %v334, %v337
  %vm339 = vweird.f32 %v302
  %vm340 = vweird.f32 %v334
  %vm341 = vmor %vm339, %vm340
  %v342 = vsel %vm341, %v334, %v338
  %v343 = vand.u32 2147483647, %v302
  %vm344 = vcmp.eq.f32.partialorder %v343, 8.507059e+37
  %v345 = vand.u32 %v302, 2147483648
  %v346 = vor.u32 1.1754944e-38, %v345
  %v347 = vsel %vm344, %v346, %v342
  %v348 = vmul.f32 1.0, %v347
  %v349 = vrcp.pop %v303
  %v350 = vmul.f32 %v303, %v349
  %v351 = vsub.f32 1.0, %v350
  %v352 = vmul.f32 %v349, %v351
  %v353 = vadd.f32 %v349, %v352
  %vm354 = vweird.f32 %v303
  %vm355 = vweird.f32 %v349
  %vm356 = vmor %vm354, %vm355
  %v357 = vsel %vm356, %v349, %v353
  %v358 = vand.u32 2147483647, %v303
  %vm359 = vcmp.eq.f32.partialorder %v358, 8.507059e+37
  %v360 = vand.u32 %v303, 2147483648
  %v361 = vor.u32 1.1754944e-38, %v360
  %v362 = vsel %vm359, %v361, %v357
  %v363 = vmul.f32 1.0, %v362
  %v364 = vmul.f32 %v284, %v318
  %v365 = vmul.f32 %v285, %v333
  %v366 = vmul.f32 %v286, %v348
  %v367 = vmul.f32 %v287, %v363
  %v368 = vld [vmem:[%s9] sm:$0x3]
  %370 = vset.pattern.permute.xlu0 0
  %371 = vperm.xlu0 %370, %v368
  %v372 = vpop.permute.xlu0 %371
  %v374 = vperm.slane %v228, 0
  %v375 = vperm.slane %v229, 0
  %v376 = vperm.slane %v230, 0
  %v377 = vperm.slane %v231, 0
  %v378 = vmul.f32 %v372, %v374
  %v379 = vmul.f32 %v372, %v375
  %v380 = vmul.f32 %v372, %v376
  %v381 = vmul.f32 %v372, %v377
  %382 = vset.pattern.permute.xlu0 1
  %383 = vperm.xlu0 %382, %v368
  %v384 = vpop.permute.xlu0 %383
  %v386 = vperm.slane %v228, 1
  %v387 = vperm.slane %v229, 1
  %v388 = vperm.slane %v230, 1
  %v389 = vperm.slane %v231, 1
  %v390 = vmul.f32 %v384, %v386
  %v391 = vmul.f32 %v384, %v387
  %v392 = vmul.f32 %v384, %v388
  %v393 = vmul.f32 %v384, %v389
  %v394 = vadd.f32 %v378, %v390
  %v395 = vadd.f32 %v379, %v391
  %v396 = vadd.f32 %v380, %v392
  %v397 = vadd.f32 %v381, %v393
  %v398 = vld [vmem:[%s10] sm:$0x3]
  %400 = vset.pattern.permute.xlu0 0
  %401 = vperm.xlu0 %400, %v398
  %v402 = vpop.permute.xlu0 %401
  %v404 = vadd.f32 %v394, %v402
  %v405 = vadd.f32 %v395, %v402
  %v406 = vadd.f32 %v396, %v402
  %v407 = vadd.f32 %v397, %v402
  %v408 = vxor.u32 %v404, 2147483648
  %v409 = vxor.u32 %v405, 2147483648
  %v410 = vxor.u32 %v406, 2147483648
  %v411 = vxor.u32 %v407, 2147483648
  %v412 = vmul.f32 %v408, 1.442695
  %v413 = vpow.pop %v412
  %v414 = vmul.f32 %v409, 1.442695
  %v415 = vpow.pop %v414
  %v416 = vmul.f32 %v410, 1.442695
  %v417 = vpow.pop %v416
  %v418 = vmul.f32 %v411, 1.442695
  %v419 = vpow.pop %v418
  %v420 = vadd.f32 %v413, 1.0
  %v421 = vadd.f32 %v415, 1.0
  %v422 = vadd.f32 %v417, 1.0
  %v423 = vadd.f32 %v419, 1.0
  %v424 = vrcp.pop %v420
  %v425 = vmul.f32 %v420, %v424
  %v426 = vsub.f32 1.0, %v425
  %v427 = vmul.f32 %v424, %v426
  %v428 = vadd.f32 %v424, %v427
  %vm429 = vweird.f32 %v420
  %vm430 = vweird.f32 %v424
  %vm431 = vmor %vm429, %vm430
  %v432 = vsel %vm431, %v424, %v428
  %v433 = vand.u32 2147483647, %v420
  %vm434 = vcmp.eq.f32.partialorder %v433, 8.507059e+37
  %v435 = vand.u32 %v420, 2147483648
  %v436 = vor.u32 1.1754944e-38, %v435
  %v437 = vsel %vm434, %v436, %v432
  %v438 = vmul.f32 1.0, %v437
  %v439 = vrcp.pop %v421
  %v440 = vmul.f32 %v421, %v439
  %v441 = vsub.f32 1.0, %v440
  %v442 = vmul.f32 %v439, %v441
  %v443 = vadd.f32 %v439, %v442
  %vm444 = vweird.f32 %v421
  %vm445 = vweird.f32 %v439
  %vm446 = vmor %vm444, %vm445
  %v447 = vsel %vm446, %v439, %v443
  %v448 = vand.u32 2147483647, %v421
  %vm449 = vcmp.eq.f32.partialorder %v448, 8.507059e+37
  %v450 = vand.u32 %v421, 2147483648
  %v451 = vor.u32 1.1754944e-38, %v450
  %v452 = vsel %vm449, %v451, %v447
  %v453 = vmul.f32 1.0, %v452
  %v454 = vrcp.pop %v422
  %v455 = vmul.f32 %v422, %v454
  %v456 = vsub.f32 1.0, %v455
  %v457 = vmul.f32 %v454, %v456
  %v458 = vadd.f32 %v454, %v457
  %vm459 = vweird.f32 %v422
  %vm460 = vweird.f32 %v454
  %vm461 = vmor %vm459, %vm460
  %v462 = vsel %vm461, %v454, %v458
  %v463 = vand.u32 2147483647, %v422
  %vm464 = vcmp.eq.f32.partialorder %v463, 8.507059e+37
  %v465 = vand.u32 %v422, 2147483648
  %v466 = vor.u32 1.1754944e-38, %v465
  %v467 = vsel %vm464, %v466, %v462
  %v468 = vmul.f32 1.0, %v467
  %v469 = vrcp.pop %v423
  %v470 = vmul.f32 %v423, %v469
  %v471 = vsub.f32 1.0, %v470
  %v472 = vmul.f32 %v469, %v471
  %v473 = vadd.f32 %v469, %v472
  %vm474 = vweird.f32 %v423
  %vm475 = vweird.f32 %v469
  %vm476 = vmor %vm474, %vm475
  %v477 = vsel %vm476, %v469, %v473
  %v478 = vand.u32 2147483647, %v423
  %vm479 = vcmp.eq.f32.partialorder %v478, 8.507059e+37
  %v480 = vand.u32 %v423, 2147483648
  %v481 = vor.u32 1.1754944e-38, %v480
  %v482 = vsel %vm479, %v481, %v477
  %v483 = vmul.f32 1.0, %v482
  %v484 = vmul.f32 %v404, %v438
  %v485 = vmul.f32 %v405, %v453
  %v486 = vmul.f32 %v406, %v468
  %v487 = vmul.f32 %v407, %v483
  %488 = vrot.lane.b32.xlu0 %v484, 17
  %v489 = vpop.permute.xlu0 %488
  %490 = vrot.lane.b32.xlu0 %v485, 17
  %v491 = vpop.permute.xlu0 %490
  %492 = vrot.lane.b32.xlu0 %v486, 17
  %v493 = vpop.permute.xlu0 %492
  %494 = vrot.lane.b32.xlu0 %v487, 17
  %v495 = vpop.permute.xlu0 %494
  %v496 = vlaneseq
  %v497 = vand.u32 %v496, 127
  %vm498 = vcmp.lt.s32.totalorder %v497, 17
  %v499 = vsel %vm498, %v493, %v495
  %v500 = vsel %vm498, %v491, %v493
  %v501 = vsel %vm498, %v489, %v491
  %v502 = vsel %vm498, %v495, %v489
  %v503 = vld [vmem:[%s11] sm:$0x3]
  %505 = vset.pattern.permute.xlu0 0
  %506 = vperm.xlu0 %505, %v503
  %v507 = vpop.permute.xlu0 %506
  %v509 = vperm.slane %v502, 0
  %v510 = vperm.slane %v501, 0
  %v511 = vperm.slane %v500, 0
  %v512 = vperm.slane %v499, 0
  %v513 = vmul.f32 %v507, %v509
  %v514 = vmul.f32 %v507, %v510
  %v515 = vmul.f32 %v507, %v511
  %v516 = vmul.f32 %v507, %v512
  %517 = vset.pattern.permute.xlu0 1
  %518 = vperm.xlu0 %517, %v503
  %v519 = vpop.permute.xlu0 %518
  %v521 = vperm.slane %v502, 1
  %v522 = vperm.slane %v501, 1
  %v523 = vperm.slane %v500, 1
  %v524 = vperm.slane %v499, 1
  %v525 = vmul.f32 %v519, %v521
  %v526 = vmul.f32 %v519, %v522
  %v527 = vmul.f32 %v519, %v523
  %v528 = vmul.f32 %v519, %v524
  %v529 = vadd.f32 %v513, %v525
  %v530 = vadd.f32 %v514, %v526
  %v531 = vadd.f32 %v515, %v527
  %v532 = vadd.f32 %v516, %v528
  %v533 = vld [vmem:[%s1] ss:$8 sm:$0xf]
  %v535 = vperm.slane %v533, 0
  %v536 = vperm.slane %v533, 1
  %v537 = vperm.slane %v533, 2
  %v538 = vperm.slane %v533, 3
  %v543 = vmul.f32 %v529, %v535
  %v544 = vmul.f32 %v530, %v536
  %v545 = vmul.f32 %v531, %v537
  %v546 = vmul.f32 %v532, %v538
  %547 = vrot.lane.b32.xlu0 %v484, 16
  %v548 = vpop.permute.xlu0 %547
  %549 = vrot.lane.b32.xlu0 %v485, 16
  %v550 = vpop.permute.xlu0 %549
  %551 = vrot.lane.b32.xlu0 %v486, 16
  %v552 = vpop.permute.xlu0 %551
  %553 = vrot.lane.b32.xlu0 %v487, 16
  %v554 = vpop.permute.xlu0 %553
  %vm555 = vcmp.lt.s32.totalorder %v497, 16
  %v556 = vsel %vm555, %v552, %v554
  %v557 = vsel %vm555, %v550, %v552
  %v558 = vsel %vm555, %v548, %v550
  %v559 = vsel %vm555, %v554, %v548
  %s560 = scalar_lea.vmem %s11, 2
  %v561 = vld [vmem:[%s560] sm:$0x3]
  %563 = vset.pattern.permute.xlu0 0
  %564 = vperm.xlu0 %563, %v561
  %v565 = vpop.permute.xlu0 %564
  %v567 = vperm.slane %v559, 0
  %v568 = vperm.slane %v558, 0
  %v569 = vperm.slane %v557, 0
  %v570 = vperm.slane %v556, 0
  %v571 = vmul.f32 %v565, %v567
  %v572 = vmul.f32 %v565, %v568
  %v573 = vmul.f32 %v565, %v569
  %v574 = vmul.f32 %v565, %v570
  %575 = vset.pattern.permute.xlu0 1
  %576 = vperm.xlu0 %575, %v561
  %v577 = vpop.permute.xlu0 %576
  %v579 = vperm.slane %v559, 1
  %v580 = vperm.slane %v558, 1
  %v581 = vperm.slane %v557, 1
  %v582 = vperm.slane %v556, 1
  %v583 = vmul.f32 %v577, %v579
  %v584 = vmul.f32 %v577, %v580
  %v585 = vmul.f32 %v577, %v581
  %v586 = vmul.f32 %v577, %v582
  %v587 = vadd.f32 %v571, %v583
  %v588 = vadd.f32 %v572, %v584
  %v589 = vadd.f32 %v573, %v585
  %v590 = vadd.f32 %v574, %v586
  %s591 = scalar_lea.vmem %s1, 1
  %v592 = vld [vmem:[%s591] ss:$8 sm:$0xf]
  %v594 = vperm.slane %v592, 0
  %v595 = vperm.slane %v592, 1
  %v596 = vperm.slane %v592, 2
  %v597 = vperm.slane %v592, 3
  %v602 = vmul.f32 %v587, %v594
  %v603 = vmul.f32 %v588, %v595
  %v604 = vmul.f32 %v589, %v596
  %v605 = vmul.f32 %v590, %v597
  %v606 = vadd.f32 %v543, %v602
  %v607 = vadd.f32 %v544, %v603
  %v608 = vadd.f32 %v545, %v604
  %v609 = vadd.f32 %v546, %v605
  %610 = vrot.lane.b32.xlu0 %v484, 15
  %v611 = vpop.permute.xlu0 %610
  %612 = vrot.lane.b32.xlu0 %v485, 15
  %v613 = vpop.permute.xlu0 %612
  %614 = vrot.lane.b32.xlu0 %v486, 15
  %v615 = vpop.permute.xlu0 %614
  %616 = vrot.lane.b32.xlu0 %v487, 15
  %v617 = vpop.permute.xlu0 %616
  %vm618 = vcmp.lt.s32.totalorder %v497, 15
  %v619 = vsel %vm618, %v615, %v617
  %v620 = vsel %vm618, %v613, %v615
  %v621 = vsel %vm618, %v611, %v613
  %v622 = vsel %vm618, %v617, %v611
  %s623 = scalar_lea.vmem %s11, 4
  %v624 = vld [vmem:[%s623] sm:$0x3]
  %626 = vset.pattern.permute.xlu0 0
  %627 = vperm.xlu0 %626, %v624
  %v628 = vpop.permute.xlu0 %627
  %v630 = vperm.slane %v622, 0
  %v631 = vperm.slane %v621, 0
  %v632 = vperm.slane %v620, 0
  %v633 = vperm.slane %v619, 0
  %v634 = vmul.f32 %v628, %v630
  %v635 = vmul.f32 %v628, %v631
  %v636 = vmul.f32 %v628, %v632
  %v637 = vmul.f32 %v628, %v633
  %638 = vset.pattern.permute.xlu0 1
  %639 = vperm.xlu0 %638, %v624
  %v640 = vpop.permute.xlu0 %639
  %v642 = vperm.slane %v622, 1
  %v643 = vperm.slane %v621, 1
  %v644 = vperm.slane %v620, 1
  %v645 = vperm.slane %v619, 1
  %v646 = vmul.f32 %v640, %v642
  %v647 = vmul.f32 %v640, %v643
  %v648 = vmul.f32 %v640, %v644
  %v649 = vmul.f32 %v640, %v645
  %v650 = vadd.f32 %v634, %v646
  %v651 = vadd.f32 %v635, %v647
  %v652 = vadd.f32 %v636, %v648
  %v653 = vadd.f32 %v637, %v649
  %s654 = scalar_lea.vmem %s1, 2
  %v655 = vld [vmem:[%s654] ss:$8 sm:$0xf]
  %v657 = vperm.slane %v655, 0
  %v658 = vperm.slane %v655, 1
  %v659 = vperm.slane %v655, 2
  %v660 = vperm.slane %v655, 3
  %v665 = vmul.f32 %v650, %v657
  %v666 = vmul.f32 %v651, %v658
  %v667 = vmul.f32 %v652, %v659
  %v668 = vmul.f32 %v653, %v660
  %v669 = vadd.f32 %v606, %v665
  %v670 = vadd.f32 %v607, %v666
  %v671 = vadd.f32 %v608, %v667
  %v672 = vadd.f32 %v609, %v668
  %673 = vrot.lane.b32.xlu0 %v484, 1
  %v674 = vpop.permute.xlu0 %673
  %675 = vrot.lane.b32.xlu0 %v485, 1
  %v676 = vpop.permute.xlu0 %675
  %677 = vrot.lane.b32.xlu0 %v486, 1
  %v678 = vpop.permute.xlu0 %677
  %679 = vrot.lane.b32.xlu0 %v487, 1
  %v680 = vpop.permute.xlu0 %679
  %vm681 = vcmp.lt.s32.totalorder %v497, 1
  %v682 = vsel %vm681, %v678, %v680
  %v683 = vsel %vm681, %v676, %v678
  %v684 = vsel %vm681, %v674, %v676
  %v685 = vsel %vm681, %v680, %v674
  %s686 = scalar_lea.vmem %s11, 6
  %v687 = vld [vmem:[%s686] sm:$0x3]
  %689 = vset.pattern.permute.xlu0 0
  %690 = vperm.xlu0 %689, %v687
  %v691 = vpop.permute.xlu0 %690
  %v693 = vperm.slane %v685, 0
  %v694 = vperm.slane %v684, 0
  %v695 = vperm.slane %v683, 0
  %v696 = vperm.slane %v682, 0
  %v697 = vmul.f32 %v691, %v693
  %v698 = vmul.f32 %v691, %v694
  %v699 = vmul.f32 %v691, %v695
  %v700 = vmul.f32 %v691, %v696
  %701 = vset.pattern.permute.xlu0 1
  %702 = vperm.xlu0 %701, %v687
  %v703 = vpop.permute.xlu0 %702
  %v705 = vperm.slane %v685, 1
  %v706 = vperm.slane %v684, 1
  %v707 = vperm.slane %v683, 1
  %v708 = vperm.slane %v682, 1
  %v709 = vmul.f32 %v703, %v705
  %v710 = vmul.f32 %v703, %v706
  %v711 = vmul.f32 %v703, %v707
  %v712 = vmul.f32 %v703, %v708
  %v713 = vadd.f32 %v697, %v709
  %v714 = vadd.f32 %v698, %v710
  %v715 = vadd.f32 %v699, %v711
  %v716 = vadd.f32 %v700, %v712
  %s717 = scalar_lea.vmem %s1, 3
  %v718 = vld [vmem:[%s717] ss:$8 sm:$0xf]
  %v720 = vperm.slane %v718, 0
  %v721 = vperm.slane %v718, 1
  %v722 = vperm.slane %v718, 2
  %v723 = vperm.slane %v718, 3
  %v728 = vmul.f32 %v713, %v720
  %v729 = vmul.f32 %v714, %v721
  %v730 = vmul.f32 %v715, %v722
  %v731 = vmul.f32 %v716, %v723
  %v732 = vadd.f32 %v669, %v728
  %v733 = vadd.f32 %v670, %v729
  %v734 = vadd.f32 %v671, %v730
  %v735 = vadd.f32 %v672, %v731
  %s736 = scalar_lea.vmem %s11, 8
  %v737 = vld [vmem:[%s736] sm:$0x3]
  %739 = vset.pattern.permute.xlu0 0
  %740 = vperm.xlu0 %739, %v737
  %v741 = vpop.permute.xlu0 %740
  %v743 = vperm.slane %v484, 0
  %v744 = vperm.slane %v485, 0
  %v745 = vperm.slane %v486, 0
  %v746 = vperm.slane %v487, 0
  %v747 = vmul.f32 %v741, %v743
  %v748 = vmul.f32 %v741, %v744
  %v749 = vmul.f32 %v741, %v745
  %v750 = vmul.f32 %v741, %v746
  %751 = vset.pattern.permute.xlu0 1
  %752 = vperm.xlu0 %751, %v737
  %v753 = vpop.permute.xlu0 %752
  %v755 = vperm.slane %v484, 1
  %v756 = vperm.slane %v485, 1
  %v757 = vperm.slane %v486, 1
  %v758 = vperm.slane %v487, 1
  %v759 = vmul.f32 %v753, %v755
  %v760 = vmul.f32 %v753, %v756
  %v761 = vmul.f32 %v753, %v757
  %v762 = vmul.f32 %v753, %v758
  %v763 = vadd.f32 %v747, %v759
  %v764 = vadd.f32 %v748, %v760
  %v765 = vadd.f32 %v749, %v761
  %v766 = vadd.f32 %v750, %v762
  %s767 = scalar_lea.vmem %s1, 4
  %v768 = vld [vmem:[%s767] ss:$8 sm:$0xf]
  %v770 = vperm.slane %v768, 0
  %v771 = vperm.slane %v768, 1
  %v772 = vperm.slane %v768, 2
  %v773 = vperm.slane %v768, 3
  %v778 = vmul.f32 %v763, %v770
  %v779 = vmul.f32 %v764, %v771
  %v780 = vmul.f32 %v765, %v772
  %v781 = vmul.f32 %v766, %v773
  %v782 = vadd.f32 %v732, %v778
  %v783 = vadd.f32 %v733, %v779
  %v784 = vadd.f32 %v734, %v780
  %v785 = vadd.f32 %v735, %v781
  %786 = vrot.lane.b32.xlu0 %v484, 127
  %v787 = vpop.permute.xlu0 %786
  %788 = vrot.lane.b32.xlu0 %v485, 127
  %v789 = vpop.permute.xlu0 %788
  %790 = vrot.lane.b32.xlu0 %v486, 127
  %v791 = vpop.permute.xlu0 %790
  %792 = vrot.lane.b32.xlu0 %v487, 127
  %v793 = vpop.permute.xlu0 %792
  %vm794 = vcmp.lt.s32.totalorder %v497, 127
  %v795 = vsel %vm794, %v791, %v793
  %v796 = vsel %vm794, %v789, %v791
  %v797 = vsel %vm794, %v787, %v789
  %v798 = vsel %vm794, %v793, %v787
  %s799 = scalar_lea.vmem %s11, 10
  %v800 = vld [vmem:[%s799] sm:$0x3]
  %802 = vset.pattern.permute.xlu0 0
  %803 = vperm.xlu0 %802, %v800
  %v804 = vpop.permute.xlu0 %803
  %v806 = vperm.slane %v797, 0
  %v807 = vperm.slane %v796, 0
  %v808 = vperm.slane %v795, 0
  %v809 = vperm.slane %v798, 0
  %v810 = vmul.f32 %v804, %v806
  %v811 = vmul.f32 %v804, %v807
  %v812 = vmul.f32 %v804, %v808
  %v813 = vmul.f32 %v804, %v809
  %814 = vset.pattern.permute.xlu0 1
  %815 = vperm.xlu0 %814, %v800
  %v816 = vpop.permute.xlu0 %815
  %v818 = vperm.slane %v797, 1
  %v819 = vperm.slane %v796, 1
  %v820 = vperm.slane %v795, 1
  %v821 = vperm.slane %v798, 1
  %v822 = vmul.f32 %v816, %v818
  %v823 = vmul.f32 %v816, %v819
  %v824 = vmul.f32 %v816, %v820
  %v825 = vmul.f32 %v816, %v821
  %v826 = vadd.f32 %v810, %v822
  %v827 = vadd.f32 %v811, %v823
  %v828 = vadd.f32 %v812, %v824
  %v829 = vadd.f32 %v813, %v825
  %s830 = scalar_lea.vmem %s1, 5
  %v831 = vld [vmem:[%s830] ss:$8 sm:$0xf]
  %v833 = vperm.slane %v831, 0
  %v834 = vperm.slane %v831, 1
  %v835 = vperm.slane %v831, 2
  %v836 = vperm.slane %v831, 3
  %v841 = vmul.f32 %v826, %v833
  %v842 = vmul.f32 %v827, %v834
  %v843 = vmul.f32 %v828, %v835
  %v844 = vmul.f32 %v829, %v836
  %v845 = vadd.f32 %v782, %v841
  %v846 = vadd.f32 %v783, %v842
  %v847 = vadd.f32 %v784, %v843
  %v848 = vadd.f32 %v785, %v844
  %849 = vrot.lane.b32.xlu0 %v484, 113
  %v850 = vpop.permute.xlu0 %849
  %851 = vrot.lane.b32.xlu0 %v485, 113
  %v852 = vpop.permute.xlu0 %851
  %853 = vrot.lane.b32.xlu0 %v486, 113
  %v854 = vpop.permute.xlu0 %853
  %855 = vrot.lane.b32.xlu0 %v487, 113
  %v856 = vpop.permute.xlu0 %855
  %vm857 = vcmp.lt.s32.totalorder %v497, 113
  %v858 = vsel %vm857, %v854, %v856
  %v859 = vsel %vm857, %v852, %v854
  %v860 = vsel %vm857, %v850, %v852
  %v861 = vsel %vm857, %v856, %v850
  %s862 = scalar_lea.vmem %s11, 12
  %v863 = vld [vmem:[%s862] sm:$0x3]
  %865 = vset.pattern.permute.xlu0 0
  %866 = vperm.xlu0 %865, %v863
  %v867 = vpop.permute.xlu0 %866
  %v869 = vperm.slane %v860, 0
  %v870 = vperm.slane %v859, 0
  %v871 = vperm.slane %v858, 0
  %v872 = vperm.slane %v861, 0
  %v873 = vmul.f32 %v867, %v869
  %v874 = vmul.f32 %v867, %v870
  %v875 = vmul.f32 %v867, %v871
  %v876 = vmul.f32 %v867, %v872
  %877 = vset.pattern.permute.xlu0 1
  %878 = vperm.xlu0 %877, %v863
  %v879 = vpop.permute.xlu0 %878
  %v881 = vperm.slane %v860, 1
  %v882 = vperm.slane %v859, 1
  %v883 = vperm.slane %v858, 1
  %v884 = vperm.slane %v861, 1
  %v885 = vmul.f32 %v879, %v881
  %v886 = vmul.f32 %v879, %v882
  %v887 = vmul.f32 %v879, %v883
  %v888 = vmul.f32 %v879, %v884
  %v889 = vadd.f32 %v873, %v885
  %v890 = vadd.f32 %v874, %v886
  %v891 = vadd.f32 %v875, %v887
  %v892 = vadd.f32 %v876, %v888
  %s893 = scalar_lea.vmem %s1, 6
  %v894 = vld [vmem:[%s893] ss:$8 sm:$0xf]
  %v896 = vperm.slane %v894, 0
  %v897 = vperm.slane %v894, 1
  %v898 = vperm.slane %v894, 2
  %v899 = vperm.slane %v894, 3
  %v904 = vmul.f32 %v889, %v896
  %v905 = vmul.f32 %v890, %v897
  %v906 = vmul.f32 %v891, %v898
  %v907 = vmul.f32 %v892, %v899
  %v908 = vadd.f32 %v845, %v904
  %v909 = vadd.f32 %v846, %v905
  %v910 = vadd.f32 %v847, %v906
  %v911 = vadd.f32 %v848, %v907
  %912 = vrot.lane.b32.xlu0 %v484, 112
  %v913 = vpop.permute.xlu0 %912
  %914 = vrot.lane.b32.xlu0 %v485, 112
  %v915 = vpop.permute.xlu0 %914
  %916 = vrot.lane.b32.xlu0 %v486, 112
  %v917 = vpop.permute.xlu0 %916
  %918 = vrot.lane.b32.xlu0 %v487, 112
  %v919 = vpop.permute.xlu0 %918
  %vm920 = vcmp.lt.s32.totalorder %v497, 112
  %v921 = vsel %vm920, %v917, %v919
  %v922 = vsel %vm920, %v915, %v917
  %v923 = vsel %vm920, %v913, %v915
  %v924 = vsel %vm920, %v919, %v913
  %s925 = scalar_lea.vmem %s11, 14
  %v926 = vld [vmem:[%s925] sm:$0x3]
  %928 = vset.pattern.permute.xlu0 0
  %929 = vperm.xlu0 %928, %v926
  %v930 = vpop.permute.xlu0 %929
  %v932 = vperm.slane %v923, 0
  %v933 = vperm.slane %v922, 0
  %v934 = vperm.slane %v921, 0
  %v935 = vperm.slane %v924, 0
  %v936 = vmul.f32 %v930, %v932
  %v937 = vmul.f32 %v930, %v933
  %v938 = vmul.f32 %v930, %v934
  %v939 = vmul.f32 %v930, %v935
  %940 = vset.pattern.permute.xlu0 1
  %941 = vperm.xlu0 %940, %v926
  %v942 = vpop.permute.xlu0 %941
  %v944 = vperm.slane %v923, 1
  %v945 = vperm.slane %v922, 1
  %v946 = vperm.slane %v921, 1
  %v947 = vperm.slane %v924, 1
  %v948 = vmul.f32 %v942, %v944
  %v949 = vmul.f32 %v942, %v945
  %v950 = vmul.f32 %v942, %v946
  %v951 = vmul.f32 %v942, %v947
  %v952 = vadd.f32 %v936, %v948
  %v953 = vadd.f32 %v937, %v949
  %v954 = vadd.f32 %v938, %v950
  %v955 = vadd.f32 %v939, %v951
  %s956 = scalar_lea.vmem %s1, 7
  %v957 = vld [vmem:[%s956] ss:$8 sm:$0xf]
  %v959 = vperm.slane %v957, 0
  %v960 = vperm.slane %v957, 1
  %v961 = vperm.slane %v957, 2
  %v962 = vperm.slane %v957, 3
  %v967 = vmul.f32 %v952, %v959
  %v968 = vmul.f32 %v953, %v960
  %v969 = vmul.f32 %v954, %v961
  %v970 = vmul.f32 %v955, %v962
  %v971 = vadd.f32 %v908, %v967
  %v972 = vadd.f32 %v909, %v968
  %v973 = vadd.f32 %v910, %v969
  %v974 = vadd.f32 %v911, %v970
  %975 = vrot.lane.b32.xlu0 %v484, 111
  %v976 = vpop.permute.xlu0 %975
  %977 = vrot.lane.b32.xlu0 %v485, 111
  %v978 = vpop.permute.xlu0 %977
  %979 = vrot.lane.b32.xlu0 %v486, 111
  %v980 = vpop.permute.xlu0 %979
  %981 = vrot.lane.b32.xlu0 %v487, 111
  %v982 = vpop.permute.xlu0 %981
  %vm983 = vcmp.lt.s32.totalorder %v497, 111
  %v984 = vsel %vm983, %v980, %v982
  %v985 = vsel %vm983, %v978, %v980
  %v986 = vsel %vm983, %v976, %v978
  %v987 = vsel %vm983, %v982, %v976
  %s988 = scalar_lea.vmem %s11, 16
  %v989 = vld [vmem:[%s988] sm:$0x3]
  %991 = vset.pattern.permute.xlu0 0
  %992 = vperm.xlu0 %991, %v989
  %v993 = vpop.permute.xlu0 %992
  %v995 = vperm.slane %v986, 0
  %v996 = vperm.slane %v985, 0
  %v997 = vperm.slane %v984, 0
  %v998 = vperm.slane %v987, 0
  %v999 = vmul.f32 %v993, %v995
  %v1000 = vmul.f32 %v993, %v996
  %v1001 = vmul.f32 %v993, %v997
  %v1002 = vmul.f32 %v993, %v998
  %1003 = vset.pattern.permute.xlu0 1
  %1004 = vperm.xlu0 %1003, %v989
  %v1005 = vpop.permute.xlu0 %1004
  %v1007 = vperm.slane %v986, 1
  %v1008 = vperm.slane %v985, 1
  %v1009 = vperm.slane %v984, 1
  %v1010 = vperm.slane %v987, 1
  %v1011 = vmul.f32 %v1005, %v1007
  %v1012 = vmul.f32 %v1005, %v1008
  %v1013 = vmul.f32 %v1005, %v1009
  %v1014 = vmul.f32 %v1005, %v1010
  %v1015 = vadd.f32 %v999, %v1011
  %v1016 = vadd.f32 %v1000, %v1012
  %v1017 = vadd.f32 %v1001, %v1013
  %v1018 = vadd.f32 %v1002, %v1014
  %s1019 = scalar_lea.vmem %s1, 32
  %v1020 = vld [vmem:[%s1019] ss:$8 sm:$0xf]
  %v1022 = vperm.slane %v1020, 0
  %v1023 = vperm.slane %v1020, 1
  %v1024 = vperm.slane %v1020, 2
  %v1025 = vperm.slane %v1020, 3
  %v1030 = vmul.f32 %v1015, %v1022
  %v1031 = vmul.f32 %v1016, %v1023
  %v1032 = vmul.f32 %v1017, %v1024
  %v1033 = vmul.f32 %v1018, %v1025
  %v1034 = vadd.f32 %v971, %v1030
  %v1035 = vadd.f32 %v972, %v1031
  %v1036 = vadd.f32 %v973, %v1032
  %v1037 = vadd.f32 %v974, %v1033
  %v1038 = vld [vmem:[%s12] sm:$0x3]
  %1040 = vset.pattern.permute.xlu0 0
  %1041 = vperm.xlu0 %1040, %v1038
  %v1042 = vpop.permute.xlu0 %1041
  %v1044 = vadd.f32 %v1034, %v1042
  %v1045 = vadd.f32 %v1035, %v1042
  %v1046 = vadd.f32 %v1036, %v1042
  %v1047 = vadd.f32 %v1037, %v1042
  %v1048 = vxor.u32 %v1044, 2147483648
  %v1049 = vxor.u32 %v1045, 2147483648
  %v1050 = vxor.u32 %v1046, 2147483648
  %v1051 = vxor.u32 %v1047, 2147483648
  %v1052 = vmul.f32 %v1048, 1.442695
  %v1053 = vpow.pop %v1052
  %v1054 = vmul.f32 %v1049, 1.442695
  %v1055 = vpow.pop %v1054
  %v1056 = vmul.f32 %v1050, 1.442695
  %v1057 = vpow.pop %v1056
  %v1058 = vmul.f32 %v1051, 1.442695
  %v1059 = vpow.pop %v1058
  %v1060 = vadd.f32 %v1053, 1.0
  %v1061 = vadd.f32 %v1055, 1.0
  %v1062 = vadd.f32 %v1057, 1.0
  %v1063 = vadd.f32 %v1059, 1.0
  %v1064 = vrcp.pop %v1060
  %v1065 = vmul.f32 %v1060, %v1064
  %v1066 = vsub.f32 1.0, %v1065
  %v1067 = vmul.f32 %v1064, %v1066
  %v1068 = vadd.f32 %v1064, %v1067
  %vm1069 = vweird.f32 %v1060
  %vm1070 = vweird.f32 %v1064
  %vm1071 = vmor %vm1069, %vm1070
  %v1072 = vsel %vm1071, %v1064, %v1068
  %v1073 = vand.u32 2147483647, %v1060
  %vm1074 = vcmp.eq.f32.partialorder %v1073, 8.507059e+37
  %v1075 = vand.u32 %v1060, 2147483648
  %v1076 = vor.u32 1.1754944e-38, %v1075
  %v1077 = vsel %vm1074, %v1076, %v1072
  %v1078 = vmul.f32 1.0, %v1077
  %v1079 = vrcp.pop %v1061
  %v1080 = vmul.f32 %v1061, %v1079
  %v1081 = vsub.f32 1.0, %v1080
  %v1082 = vmul.f32 %v1079, %v1081
  %v1083 = vadd.f32 %v1079, %v1082
  %vm1084 = vweird.f32 %v1061
  %vm1085 = vweird.f32 %v1079
  %vm1086 = vmor %vm1084, %vm1085
  %v1087 = vsel %vm1086, %v1079, %v1083
  %v1088 = vand.u32 2147483647, %v1061
  %vm1089 = vcmp.eq.f32.partialorder %v1088, 8.507059e+37
  %v1090 = vand.u32 %v1061, 2147483648
  %v1091 = vor.u32 1.1754944e-38, %v1090
  %v1092 = vsel %vm1089, %v1091, %v1087
  %v1093 = vmul.f32 1.0, %v1092
  %v1094 = vrcp.pop %v1062
  %v1095 = vmul.f32 %v1062, %v1094
  %v1096 = vsub.f32 1.0, %v1095
  %v1097 = vmul.f32 %v1094, %v1096
  %v1098 = vadd.f32 %v1094, %v1097
  %vm1099 = vweird.f32 %v1062
  %vm1100 = vweird.f32 %v1094
  %vm1101 = vmor %vm1099, %vm1100
  %v1102 = vsel %vm1101, %v1094, %v1098
  %v1103 = vand.u32 2147483647, %v1062
  %vm1104 = vcmp.eq.f32.partialorder %v1103, 8.507059e+37
  %v1105 = vand.u32 %v1062, 2147483648
  %v1106 = vor.u32 1.1754944e-38, %v1105
  %v1107 = vsel %vm1104, %v1106, %v1102
  %v1108 = vmul.f32 1.0, %v1107
  %v1109 = vrcp.pop %v1063
  %v1110 = vmul.f32 %v1063, %v1109
  %v1111 = vsub.f32 1.0, %v1110
  %v1112 = vmul.f32 %v1109, %v1111
  %v1113 = vadd.f32 %v1109, %v1112
  %vm1114 = vweird.f32 %v1063
  %vm1115 = vweird.f32 %v1109
  %vm1116 = vmor %vm1114, %vm1115
  %v1117 = vsel %vm1116, %v1109, %v1113
  %v1118 = vand.u32 2147483647, %v1063
  %vm1119 = vcmp.eq.f32.partialorder %v1118, 8.507059e+37
  %v1120 = vand.u32 %v1063, 2147483648
  %v1121 = vor.u32 1.1754944e-38, %v1120
  %v1122 = vsel %vm1119, %v1121, %v1117
  %v1123 = vmul.f32 1.0, %v1122
  %v1124 = vmul.f32 %v1044, %v1078
  %v1125 = vmul.f32 %v1045, %v1093
  %v1126 = vmul.f32 %v1046, %v1108
  %v1127 = vmul.f32 %v1047, %v1123
  %v1128 = vadd.f32 %v228, %v1124
  %v1129 = vadd.f32 %v229, %v1125
  %v1130 = vadd.f32 %v230, %v1126
  %v1131 = vadd.f32 %v231, %v1127
  %v1132 = vld [vmem:[%s6] sm:$0xf]
  %1134 = vset.pattern.permute.xlu0 0
  %1135 = vperm.xlu0 %1134, %v1132
  %v1136 = vpop.permute.xlu0 %1135
  %v1138 = vperm.slane %v1128, 0
  %v1139 = vperm.slane %v1129, 0
  %v1140 = vperm.slane %v1130, 0
  %v1141 = vperm.slane %v1131, 0
  %v1142 = vmul.f32 %v1136, %v1138
  %v1143 = vmul.f32 %v1136, %v1139
  %v1144 = vmul.f32 %v1136, %v1140
  %v1145 = vmul.f32 %v1136, %v1141
  %1146 = vset.pattern.permute.xlu0 1
  %1147 = vperm.xlu0 %1146, %v1132
  %v1148 = vpop.permute.xlu0 %1147
  %v1150 = vperm.slane %v1128, 1
  %v1151 = vperm.slane %v1129, 1
  %v1152 = vperm.slane %v1130, 1
  %v1153 = vperm.slane %v1131, 1
  %v1154 = vmul.f32 %v1148, %v1150
  %v1155 = vmul.f32 %v1148, %v1151
  %v1156 = vmul.f32 %v1148, %v1152
  %v1157 = vmul.f32 %v1148, %v1153
  %v1158 = vadd.f32 %v1142, %v1154
  %v1159 = vadd.f32 %v1143, %v1155
  %v1160 = vadd.f32 %v1144, %v1156
  %v1161 = vadd.f32 %v1145, %v1157
  %v1162 = vld [vmem:[%s7] sm:$0xf]
  %1164 = vset.pattern.permute.xlu0 0
  %1165 = vperm.xlu0 %1164, %v1162
  %v1166 = vpop.permute.xlu0 %1165
  %v1168 = vperm.slane %v364, 0
  %v1169 = vperm.slane %v365, 0
  %v1170 = vperm.slane %v366, 0
  %v1171 = vperm.slane %v367, 0
  %v1172 = vmul.f32 %v1166, %v1168
  %v1173 = vmul.f32 %v1166, %v1169
  %v1174 = vmul.f32 %v1166, %v1170
  %v1175 = vmul.f32 %v1166, %v1171
  %1176 = vset.pattern.permute.xlu0 1
  %1177 = vperm.xlu0 %1176, %v1162
  %v1178 = vpop.permute.xlu0 %1177
  %v1180 = vperm.slane %v364, 1
  %v1181 = vperm.slane %v365, 1
  %v1182 = vperm.slane %v366, 1
  %v1183 = vperm.slane %v367, 1
  %v1184 = vmul.f32 %v1178, %v1180
  %v1185 = vmul.f32 %v1178, %v1181
  %v1186 = vmul.f32 %v1178, %v1182
  %v1187 = vmul.f32 %v1178, %v1183
  %v1188 = vadd.f32 %v1172, %v1184
  %v1189 = vadd.f32 %v1173, %v1185
  %v1190 = vadd.f32 %v1174, %v1186
  %v1191 = vadd.f32 %v1175, %v1187
  %v1192 = vadd.f32 %v1158, %v1188
  %v1193 = vadd.f32 %v1159, %v1189
  %v1194 = vadd.f32 %v1160, %v1190
  %v1195 = vadd.f32 %v1161, %v1191
  %v1196 = vld [vmem:[%s8] sm:$0xf]
  %1198 = vset.pattern.permute.xlu0 0
  %1199 = vperm.xlu0 %1198, %v1196
  %v1200 = vpop.permute.xlu0 %1199
  %v1202 = vadd.f32 %v1192, %v1200
  %v1203 = vadd.f32 %v1193, %v1200
  %v1204 = vadd.f32 %v1194, %v1200
  %v1205 = vadd.f32 %v1195, %v1200
  %v1206 = vxor.u32 %v1202, 2147483648
  %v1207 = vxor.u32 %v1203, 2147483648
  %v1208 = vxor.u32 %v1204, 2147483648
  %v1209 = vxor.u32 %v1205, 2147483648
  %v1210 = vmul.f32 %v1206, 1.442695
  %v1211 = vpow.pop %v1210
  %v1212 = vmul.f32 %v1207, 1.442695
  %v1213 = vpow.pop %v1212
  %v1214 = vmul.f32 %v1208, 1.442695
  %v1215 = vpow.pop %v1214
  %v1216 = vmul.f32 %v1209, 1.442695
  %v1217 = vpow.pop %v1216
  %v1218 = vadd.f32 %v1211, 1.0
  %v1219 = vadd.f32 %v1213, 1.0
  %v1220 = vadd.f32 %v1215, 1.0
  %v1221 = vadd.f32 %v1217, 1.0
  %v1222 = vrcp.pop %v1218
  %v1223 = vmul.f32 %v1218, %v1222
  %v1224 = vsub.f32 1.0, %v1223
  %v1225 = vmul.f32 %v1222, %v1224
  %v1226 = vadd.f32 %v1222, %v1225
  %vm1227 = vweird.f32 %v1218
  %vm1228 = vweird.f32 %v1222
  %vm1229 = vmor %vm1227, %vm1228
  %v1230 = vsel %vm1229, %v1222, %v1226
  %v1231 = vand.u32 2147483647, %v1218
  %vm1232 = vcmp.eq.f32.partialorder %v1231, 8.507059e+37
  %v1233 = vand.u32 %v1218, 2147483648
  %v1234 = vor.u32 1.1754944e-38, %v1233
  %v1235 = vsel %vm1232, %v1234, %v1230
  %v1236 = vmul.f32 1.0, %v1235
  %v1237 = vrcp.pop %v1219
  %v1238 = vmul.f32 %v1219, %v1237
  %v1239 = vsub.f32 1.0, %v1238
  %v1240 = vmul.f32 %v1237, %v1239
  %v1241 = vadd.f32 %v1237, %v1240
  %vm1242 = vweird.f32 %v1219
  %vm1243 = vweird.f32 %v1237
  %vm1244 = vmor %vm1242, %vm1243
  %v1245 = vsel %vm1244, %v1237, %v1241
  %v1246 = vand.u32 2147483647, %v1219
  %vm1247 = vcmp.eq.f32.partialorder %v1246, 8.507059e+37
  %v1248 = vand.u32 %v1219, 2147483648
  %v1249 = vor.u32 1.1754944e-38, %v1248
  %v1250 = vsel %vm1247, %v1249, %v1245
  %v1251 = vmul.f32 1.0, %v1250
  %v1252 = vrcp.pop %v1220
  %v1253 = vmul.f32 %v1220, %v1252
  %v1254 = vsub.f32 1.0, %v1253
  %v1255 = vmul.f32 %v1252, %v1254
  %v1256 = vadd.f32 %v1252, %v1255
  %vm1257 = vweird.f32 %v1220
  %vm1258 = vweird.f32 %v1252
  %vm1259 = vmor %vm1257, %vm1258
  %v1260 = vsel %vm1259, %v1252, %v1256
  %v1261 = vand.u32 2147483647, %v1220
  %vm1262 = vcmp.eq.f32.partialorder %v1261, 8.507059e+37
  %v1263 = vand.u32 %v1220, 2147483648
  %v1264 = vor.u32 1.1754944e-38, %v1263
  %v1265 = vsel %vm1262, %v1264, %v1260
  %v1266 = vmul.f32 1.0, %v1265
  %v1267 = vrcp.pop %v1221
  %v1268 = vmul.f32 %v1221, %v1267
  %v1269 = vsub.f32 1.0, %v1268
  %v1270 = vmul.f32 %v1267, %v1269
  %v1271 = vadd.f32 %v1267, %v1270
  %vm1272 = vweird.f32 %v1221
  %vm1273 = vweird.f32 %v1267
  %vm1274 = vmor %vm1272, %vm1273
  %v1275 = vsel %vm1274, %v1267, %v1271
  %v1276 = vand.u32 2147483647, %v1221
  %vm1277 = vcmp.eq.f32.partialorder %v1276, 8.507059e+37
  %v1278 = vand.u32 %v1221, 2147483648
  %v1279 = vor.u32 1.1754944e-38, %v1278
  %v1280 = vsel %vm1277, %v1279, %v1275
  %v1281 = vmul.f32 1.0, %v1280
  %v1282 = vmul.f32 %v1202, %v1236
  %v1283 = vmul.f32 %v1203, %v1251
  %v1284 = vmul.f32 %v1204, %v1266
  %v1285 = vmul.f32 %v1205, %v1281
  %v1290 = vrot.slane %v1283, 4
  %v1291 = vrot.slane %v1285, 4
  %vm1292 = vcmask 1043456
  %v1293 = vsel %vm1292, %v1282, %v1290
  %v1294 = vsel %vm1292, %v1284, %v1291
  %1297 = vst [vmem:[%s13] sm:$0xff] %v1293
  %1298 = vst [vmem:[%s13 + $0x8] sm:$0xff] %v1294
  // Predicated region
  $region54: #{c3_forward.1} parent=0 // pred_check
    _
  $region55: #{c3_forward.1} parent=0 // pred_check_branch
    %1300 = sbr.rel (0) target = $region57
  $region56: #{c3_forward.1} parent=0 // pred_region
    _
  $region57: #{c3_forward.1} parent=0 // pred_fallthru
    _
  // Predicated region
  $region58: #{c3_forward.1} parent=0 // pred_check
    _
  $region59: #{c3_forward.1} parent=0 // pred_check_branch
    %1302 = sbr.rel (0) target = $region61
  $region60: #{c3_forward.1} parent=0 // pred_region
    _
  $region61: #{c3_forward.1} parent=0 // pred_fallthru
    _

</llo_original>
